<compile_context>
chip_gen: v7x
topology: tpu7x:2x2x1
jax: 0.10.0
libtpu: 0.0.40
codegen_flags: <defaults>
</compile_context>

<pallas_src>
import functools

import jax
import jax.numpy as jnp
from jax.experimental import pallas as pl
from jax.experimental.pallas import tpu as pltpu

LEAK = 0.2
BN_EPS = 1e-5
_STATS_CORE_SPLIT = 2  # leading "parallel" grid axis for kernel A (v7x: 2 TCs)


def _leaky_relu(x):
    return jnp.where(x >= 0, x, LEAK * x)


def _round_up(x, m):
    return ((x + m - 1) // m) * m


def _features(x, w1, b1, w2):
    """conv1 (1x1, bias) -> leaky_relu -> conv2 (1x1, no bias). Channel-major."""
    h1 = _leaky_relu(jnp.dot(w1, x, preferred_element_type=jnp.float32) + b1)
    return jnp.dot(w2, h1, preferred_element_type=jnp.float32)


def _stats_kernel(x_ref, w1_ref, b1_ref, w2_ref, sum_ref, sumsq_ref, *,
                  p_real, tile_p, tiles_per_core, masked):
    """Per-channel sum / sum-of-squares of h2, recomputed from x (no h2 in HBM)."""
    c = pl.program_id(0)  # core-split index ("parallel")
    i = pl.program_id(1)  # tile index within this core ("arbitrary")

    @pl.when(i == 0)
    def _():
        sum_ref[...] = jnp.zeros_like(sum_ref)
        sumsq_ref[...] = jnp.zeros_like(sumsq_ref)

    h2 = _features(x_ref[...], w1_ref[...], b1_ref[...], w2_ref[...])

    if masked:
        # Zero out contributions from pad pixels (P was rounded up to a tile
        # multiple); `total` used later for mean/var is the real pixel count.
        start = (c * tiles_per_core + i) * tile_p
        lane = jax.lax.broadcasted_iota(jnp.int32, (1, tile_p), 1)
        h2 = jnp.where(start + lane < p_real, h2, 0.0)

    # NOTE: E[x^2]-E[x]^2 in f32 matches the reference; for very large P a
    # shifted/Welford merge would be more robust.
    sum_ref[...] += jnp.sum(h2, axis=1, keepdims=True)
    sumsq_ref[...] += jnp.sum(h2 * h2, axis=1, keepdims=True)


def _out_kernel(x_ref, w1_ref, b1_ref, w2_ref, scale_ref, shift_ref, w3_ref,
                out_ref):
    """Recompute h2, apply folded BN scale/shift + leaky_relu, then conv3."""
    h2 = _features(x_ref[...], w1_ref[...], b1_ref[...], w2_ref[...])
    y = _leaky_relu(h2 * scale_ref[...] + shift_ref[...])
    out = jnp.dot(w3_ref[...], y, preferred_element_type=jnp.float32)  # [1, tile_p]
    out_ref[...] = out.astype(out_ref.dtype)


def pixel_discriminator(x_nchw, params, *, tile_p=4096):
    """x_nchw: [N, C_in, H, W] float32 -> [N, 1, H, W] float32."""
    w1, b1, w2, gamma, beta, w3 = params
    n, c_in, h, w = x_nchw.shape
    ndf = w1.shape[0]
    ndf2 = w2.shape[0]
    p = n * h * w

    # NCHW -> channel-major [C_in, P] (pixels on the lane axis).
    x_cp = jnp.transpose(x_nchw, (1, 0, 2, 3)).reshape(c_in, p)

    # Tile the pixel axis; pad P up to a multiple of (core_split * tile_p)
    # instead of falling back to one giant full-array block.
    tile_p = min(tile_p, _round_up(p, 128))
    p_pad = _round_up(p, _STATS_CORE_SPLIT * tile_p)
    if p_pad != p:
        x_cp = jnp.pad(x_cp, ((0, 0), (0, p_pad - p)))
    num_tiles = p_pad // tile_p
    tiles_per_core = num_tiles // _STATS_CORE_SPLIT

    rep = lambda *_: (0, 0)  # replicated (full) operand

    # ---- kernel A: per-core partial channel stats of h2 (h2 never hits HBM) ----
    sums, sumsqs = pl.pallas_call(
        functools.partial(_stats_kernel, p_real=p, tile_p=tile_p,
                          tiles_per_core=tiles_per_core, masked=(p_pad != p)),
        out_shape=(
            jax.ShapeDtypeStruct((_STATS_CORE_SPLIT, ndf2, 1), jnp.float32),
            jax.ShapeDtypeStruct((_STATS_CORE_SPLIT, ndf2, 1), jnp.float32),
        ),
        grid_spec=pltpu.PrefetchScalarGridSpec(
            num_scalar_prefetch=0,
            grid=(_STATS_CORE_SPLIT, tiles_per_core),
            in_specs=[
                pl.BlockSpec((c_in, tile_p),
                             lambda c, i: (0, c * tiles_per_core + i)),
                pl.BlockSpec((ndf, c_in), rep),
                pl.BlockSpec((ndf, 1), rep),
                pl.BlockSpec((ndf2, ndf), rep),
            ],
            out_specs=[
                pl.BlockSpec((None, ndf2, 1), lambda c, i: (c, 0, 0)),
                pl.BlockSpec((None, ndf2, 1), lambda c, i: (c, 0, 0)),
            ],
        ),
        compiler_params=pltpu.CompilerParams(
            dimension_semantics=("parallel", "arbitrary"),
            vmem_limit_bytes=32 * 1024 * 1024),
    )(x_cp, w1, b1, w2)

    # ---- fold BN (batch statistics, biased variance) into scale/shift ----
    mean = jnp.sum(sums, axis=0) / p                      # [ndf2, 1]
    var = jnp.sum(sumsqs, axis=0) / p - mean * mean       # biased variance
    scale = gamma * jax.lax.rsqrt(var + BN_EPS)           # [ndf2, 1]
    shift = beta - mean * scale                           # [ndf2, 1]

    # ---- kernel B: recompute h2, BN + leaky_relu, conv3 (lane-dense output) ----
    out_t = pl.pallas_call(
        _out_kernel,
        out_shape=jax.ShapeDtypeStruct((num_tiles, 1, tile_p), jnp.float32),
        grid_spec=pltpu.PrefetchScalarGridSpec(
            num_scalar_prefetch=0,
            grid=(num_tiles,),
            in_specs=[
                pl.BlockSpec((c_in, tile_p), lambda i: (0, i)),
                pl.BlockSpec((ndf, c_in), rep),
                pl.BlockSpec((ndf, 1), rep),
                pl.BlockSpec((ndf2, ndf), rep),
                pl.BlockSpec((ndf2, 1), rep),
                pl.BlockSpec((ndf2, 1), rep),
                pl.BlockSpec((1, ndf2), rep),
            ],
            out_specs=pl.BlockSpec((None, 1, tile_p), lambda i: (i, 0, 0)),
        ),
        compiler_params=pltpu.CompilerParams(
            dimension_semantics=("parallel",),
            vmem_limit_bytes=32 * 1024 * 1024),
    )(x_cp, w1, b1, w2, scale, shift, w3)

    # (num_tiles, 1, tile_p) -> [P] (drop pad) -> [N, 1, H, W]
    out_flat = out_t.reshape(p_pad)[:p]
    return out_flat.reshape(n, h, w)[:, None, :, :]


def init_params(key, input_nc, ndf=64):
    """Deterministic synthetic parameters matching PixelDiscriminator shapes.

    PyTorch conv weights (out_c, in_c, 1, 1) map directly to the channel-major
    [out_c, in_c] matrices used here.
      conv1: [ndf, input_nc] + bias [ndf, 1]
      conv2: [2*ndf, ndf], no bias (BatchNorm follows)
      bn   : gamma ones / beta zeros, [2*ndf, 1]
      conv3: [1, 2*ndf], no bias
    """
    k1, k2, k3, k4 = jax.random.split(key, 4)
    w1 = jax.random.normal(k1, (ndf, input_nc), jnp.float32) * 0.2
    b1 = jax.random.normal(k2, (ndf, 1), jnp.float32) * 0.1
    w2 = jax.random.normal(k3, (2 * ndf, ndf), jnp.float32) * 0.1
    gamma = jnp.ones((2 * ndf, 1), jnp.float32)
    beta = jnp.zeros((2 * ndf, 1), jnp.float32)
    w3 = jax.random.normal(k4, (1, 2 * ndf), jnp.float32) * 0.1
    return (w1, b1, w2, gamma, beta, w3)


def _reference(x_nchw, params):
    """Pure-JAX reference of the same forward (for a correctness check)."""
    w1, b1, w2, gamma, beta, w3 = params
    n, c, h, w = x_nchw.shape
    x = jnp.transpose(x_nchw, (1, 0, 2, 3)).reshape(c, -1)    # [C_in, P]
    h1 = _leaky_relu(w1 @ x + b1)
    h2 = w2 @ h1
    mean = jnp.mean(h2, axis=1, keepdims=True)
    var = jnp.mean(h2 * h2, axis=1, keepdims=True) - mean * mean
    y = _leaky_relu((h2 - mean) * jax.lax.rsqrt(var + BN_EPS) * gamma + beta)
    out = w3 @ y                                              # [1, P]
    return jnp.transpose(out.reshape(1, n, h, w), (1, 0, 2, 3))


if __name__ == "__main__":
    key = jax.random.PRNGKey(0)
    kx, kp = jax.random.split(key)

    N, C_IN, H, W = 2, 4, 16, 16
    NDF = 64

    x = jax.random.normal(kx, (N, C_IN, H, W), jnp.float32)
    params = init_params(kp, C_IN, NDF)

    out = pixel_discriminator(x, params)
    out = jax.block_until_ready(out)

    ref = _reference(x, params)
    assert out.shape == (N, 1, H, W), out.shape
    assert jnp.allclose(out, ref, rtol=1e-4, atol=1e-4), "mismatch vs reference"

    print("KERNEL_OK")
</pallas_src>

<mosaic_0001>
module attributes {stable_mosaic.version = 11 : i64} {
  func.func @_stats_kernel(%arg0: i32, %arg1: i32, %arg2: memref<4x512xf32, #tpu.memory_space<vmem>>, %arg3: memref<64x4xf32, #tpu.memory_space<vmem>>, %arg4: memref<64x1xf32, #tpu.memory_space<vmem>>, %arg5: memref<128x64xf32, #tpu.memory_space<vmem>>, %arg6: memref<1x128x1xf32, #tpu.memory_space<vmem>>, %arg7: memref<1x128x1xf32, #tpu.memory_space<vmem>>) attributes {dimension_semantics = [#tpu.dimension_semantics<parallel>, #tpu.dimension_semantics<arbitrary>], iteration_bounds = array<i64: 2, 1>, scalar_prefetch = 0 : i64, scratch_operands = 0 : i64, tpu.core_type = #tpu.core_type<tc>, window_params = [{transform_indices = @transform_0, window_bounds = array<i64: 4, 512>}, {pipeline_mode = #tpu.pipeline_mode<synchronous>, transform_indices = @transform_1, window_bounds = array<i64: 64, 4>}, {pipeline_mode = #tpu.pipeline_mode<synchronous>, transform_indices = @transform_2, window_bounds = array<i64: 64, 1>}, {pipeline_mode = #tpu.pipeline_mode<synchronous>, transform_indices = @transform_3, window_bounds = array<i64: 128, 64>}, {transform_indices = @transform_4, window_bounds = array<i64: 1, 128, 1>}, {transform_indices = @transform_5, window_bounds = array<i64: 1, 128, 1>}]} {
    %c0_i32 = arith.constant 0 : i32
    %0 = arith.cmpi eq, %arg1, %c0_i32 : i32
    %1 = arith.extui %0 : i1 to i32
    %c0_i32_0 = arith.constant 0 : i32
    %2 = arith.cmpi ne, %1, %c0_i32_0 : i32
    scf.if %2 {
      %cst_27 = arith.constant 0.000000e+00 : f32
      %45 = vector.broadcast %cst_27 : f32 to vector<128x1xf32>
      %c0_28 = arith.constant 0 : index
      %c0_29 = arith.constant 0 : index
      %c0_30 = arith.constant 0 : index
      %46 = vector.load %arg6[%c0_28, %c0_29, %c0_30] : memref<1x128x1xf32, #tpu.memory_space<vmem>>, vector<1x128x1xf32>
      %47 = vector.shape_cast %46 : vector<1x128x1xf32> to vector<128x1xf32>
      %48 = vector.shape_cast %45 : vector<128x1xf32> to vector<1x128x1xf32>
      tpu.vector_store %arg6[%c0_28, %c0_29, %c0_30], %48 {strides = array<i32>} : memref<1x128x1xf32, #tpu.memory_space<vmem>>, vector<1x128x1xf32>,
      %cst_31 = arith.constant 0.000000e+00 : f32
      %49 = vector.broadcast %cst_31 : f32 to vector<128x1xf32>
      %c0_32 = arith.constant 0 : index
      %c0_33 = arith.constant 0 : index
      %c0_34 = arith.constant 0 : index
      %50 = vector.load %arg7[%c0_32, %c0_33, %c0_34] : memref<1x128x1xf32, #tpu.memory_space<vmem>>, vector<1x128x1xf32>
      %51 = vector.shape_cast %50 : vector<1x128x1xf32> to vector<128x1xf32>
      %52 = vector.shape_cast %49 : vector<128x1xf32> to vector<1x128x1xf32>
      tpu.vector_store %arg7[%c0_32, %c0_33, %c0_34], %52 {strides = array<i32>} : memref<1x128x1xf32, #tpu.memory_space<vmem>>, vector<1x128x1xf32>,
    } else {
    }
    %c0 = arith.constant 0 : index
    %c0_1 = arith.constant 0 : index
    %3 = vector.load %arg2[%c0, %c0_1] : memref<4x512xf32, #tpu.memory_space<vmem>>, vector<4x512xf32>
    %c0_2 = arith.constant 0 : index
    %c0_3 = arith.constant 0 : index
    %4 = vector.load %arg3[%c0_2, %c0_3] : memref<64x4xf32, #tpu.memory_space<vmem>>, vector<64x4xf32>
    %c0_4 = arith.constant 0 : index
    %c0_5 = arith.constant 0 : index
    %5 = vector.load %arg4[%c0_4, %c0_5] : memref<64x1xf32, #tpu.memory_space<vmem>>, vector<64x1xf32>
    %c0_6 = arith.constant 0 : index
    %c0_7 = arith.constant 0 : index
    %6 = vector.load %arg5[%c0_6, %c0_7] : memref<128x64xf32, #tpu.memory_space<vmem>>, vector<128x64xf32>
    %cst = arith.constant dense<0.000000e+00> : vector<64x512xf32>
    %7 = tpu.matmul %4, %3, %cst {dimension_numbers = #tpu.dot_dimension_numbers<[1], [0], [0], [1], [0, 0, 1, 1], [], []>} : vector<64x4xf32>, vector<4x512xf32>, vector<64x512xf32> -> vector<64x512xf32>
    %8 = vector.broadcast %5 : vector<64x1xf32> to vector<64x512xf32>
    %9 = arith.addf %7, %8 : vector<64x512xf32>
    %cst_8 = arith.constant 0.000000e+00 : f32
    %10 = vector.broadcast %cst_8 : f32 to vector<64x512xf32>
    %11 = arith.cmpf oge, %9, %10 : vector<64x512xf32>
    %cst_9 = arith.constant 2.000000e-01 : f32
    %12 = vector.broadcast %cst_9 : f32 to vector<64x512xf32>
    %13 = arith.mulf %12, %9 : vector<64x512xf32>
    %14 = arith.select %11, %9, %13 : vector<64x512xi1>, vector<64x512xf32>
    %cst_10 = arith.constant dense<0.000000e+00> : vector<128x512xf32>
    %15 = tpu.matmul %6, %14, %cst_10 {dimension_numbers = #tpu.dot_dimension_numbers<[1], [0], [0], [1], [0, 0, 1, 1], [], []>} : vector<128x64xf32>, vector<64x512xf32>, vector<128x512xf32> -> vector<128x512xf32>
    %c1_i32 = arith.constant 1 : i32
    %16 = arith.muli %arg0, %c1_i32 : i32
    %17 = arith.addi %16, %arg1 : i32
    %c512_i32 = arith.constant 512 : i32
    %18 = arith.muli %17, %c512_i32 : i32
    %19 = tpu.iota {dimensions = array<i32: 1>} : vector<1x512xi32>
    %20 = vector.broadcast %18 : i32 to vector<1x512xi32>
    %21 = arith.addi %20, %19 : vector<1x512xi32>
    %c512_i32_11 = arith.constant 512 : i32
    %22 = vector.broadcast %c512_i32_11 : i32 to vector<1x512xi32>
    %23 = arith.cmpi slt, %21, %22 : vector<1x512xi32>
    %cst_12 = arith.constant 0.000000e+00 : f32
    %24 = vector.shape_cast %23 : vector<1x512xi1> to vector<1x512xi1>
    %25 = vector.broadcast %24 : vector<1x512xi1> to vector<128x512xi1>
    %26 = vector.broadcast %cst_12 : f32 to vector<128x512xf32>
    %27 = arith.select %25, %15, %26 : vector<128x512xi1>, vector<128x512xf32>
    %c0_13 = arith.constant 0 : index
    %c0_14 = arith.constant 0 : index
    %c0_15 = arith.constant 0 : index
    %28 = vector.load %arg6[%c0_13, %c0_14, %c0_15] : memref<1x128x1xf32, #tpu.memory_space<vmem>>, vector<1x128x1xf32>
    %29 = vector.shape_cast %28 : vector<1x128x1xf32> to vector<128x1xf32>
    %cst_16 = arith.constant dense<0.000000e+00> : vector<128xf32>
    %30 = vector.multi_reduction <add>, %27, %cst_16 [1] : vector<128x512xf32> to vector<128xf32>
    %31 = vector.shape_cast %30 : vector<128xf32> to vector<128x1xf32>
    %32 = arith.addf %29, %31 : vector<128x1xf32>
    %c0_17 = arith.constant 0 : index
    %c0_18 = arith.constant 0 : index
    %c0_19 = arith.constant 0 : index
    %33 = vector.load %arg6[%c0_17, %c0_18, %c0_19] : memref<1x128x1xf32, #tpu.memory_space<vmem>>, vector<1x128x1xf32>
    %34 = vector.shape_cast %33 : vector<1x128x1xf32> to vector<128x1xf32>
    %35 = vector.shape_cast %32 : vector<128x1xf32> to vector<1x128x1xf32>
    tpu.vector_store %arg6[%c0_17, %c0_18, %c0_19], %35 {strides = array<i32>} : memref<1x128x1xf32, #tpu.memory_space<vmem>>, vector<1x128x1xf32>,
    %c0_20 = arith.constant 0 : index
    %c0_21 = arith.constant 0 : index
    %c0_22 = arith.constant 0 : index
    %36 = vector.load %arg7[%c0_20, %c0_21, %c0_22] : memref<1x128x1xf32, #tpu.memory_space<vmem>>, vector<1x128x1xf32>
    %37 = vector.shape_cast %36 : vector<1x128x1xf32> to vector<128x1xf32>
    %38 = arith.mulf %27, %27 : vector<128x512xf32>
    %cst_23 = arith.constant dense<0.000000e+00> : vector<128xf32>
    %39 = vector.multi_reduction <add>, %38, %cst_23 [1] : vector<128x512xf32> to vector<128xf32>
    %40 = vector.shape_cast %39 : vector<128xf32> to vector<128x1xf32>
    %41 = arith.addf %37, %40 : vector<128x1xf32>
    %c0_24 = arith.constant 0 : index
    %c0_25 = arith.constant 0 : index
    %c0_26 = arith.constant 0 : index
    %42 = vector.load %arg7[%c0_24, %c0_25, %c0_26] : memref<1x128x1xf32, #tpu.memory_space<vmem>>, vector<1x128x1xf32>
    %43 = vector.shape_cast %42 : vector<1x128x1xf32> to vector<128x1xf32>
    %44 = vector.shape_cast %41 : vector<128x1xf32> to vector<1x128x1xf32>
    tpu.vector_store %arg7[%c0_24, %c0_25, %c0_26], %44 {strides = array<i32>} : memref<1x128x1xf32, #tpu.memory_space<vmem>>, vector<1x128x1xf32>,
    return
  }
  func.func @transform_0(%arg0: i32, %arg1: i32) -> (i32, i32) {
    %c1_i32 = arith.constant 1 : i32
    %0 = arith.muli %arg0, %c1_i32 : i32
    %1 = arith.addi %0, %arg1 : i32
    %c0_i32 = arith.constant 0 : i32
    %c0_i32_0 = arith.constant 0 : i32
    return %c0_i32, %1 : i32, i32
  }
  func.func @transform_1(%arg0: i32, %arg1: i32) -> (i32, i32) {
    %c0_i32 = arith.constant 0 : i32
    %c0_i32_0 = arith.constant 0 : i32
    %c0_i32_1 = arith.constant 0 : i32
    return %c0_i32, %c0_i32_0 : i32, i32
  }
  func.func @transform_2(%arg0: i32, %arg1: i32) -> (i32, i32) {
    %c0_i32 = arith.constant 0 : i32
    %c0_i32_0 = arith.constant 0 : i32
    %c0_i32_1 = arith.constant 0 : i32
    return %c0_i32, %c0_i32_0 : i32, i32
  }
  func.func @transform_3(%arg0: i32, %arg1: i32) -> (i32, i32) {
    %c0_i32 = arith.constant 0 : i32
    %c0_i32_0 = arith.constant 0 : i32
    %c0_i32_1 = arith.constant 0 : i32
    return %c0_i32, %c0_i32_0 : i32, i32
  }
  func.func @transform_4(%arg0: i32, %arg1: i32) -> (i32, i32, i32) {
    %c0_i32 = arith.constant 0 : i32
    %c0_i32_0 = arith.constant 0 : i32
    %c0_i32_1 = arith.constant 0 : i32
    return %arg0, %c0_i32, %c0_i32_0 : i32, i32, i32
  }
  func.func @transform_5(%arg0: i32, %arg1: i32) -> (i32, i32, i32) {
    %c0_i32 = arith.constant 0 : i32
    %c0_i32_0 = arith.constant 0 : i32
    %c0_i32_1 = arith.constant 0 : i32
    return %arg0, %c0_i32, %c0_i32_0 : i32, i32, i32
  }
}

</mosaic_0001>

<llo_original>
// kernel: tpu_custom_call.1
$region0: #{tpu_custom_call.1}
  #allocation0 [shape = 'u32[]', space=smem, size = 0x4, offset = 0x4, fixed_abs, tag = 'smem constant byte address 0x4 - core index']
  #allocation1 [shape = 'u32[144,128]{1,0:T(1,128)}', space=vmem, size = 0x12000, scoped, tag = 'internal scratch']
  %s0 = inlined_call_operand.vmem [shape: f32[4,1024], index: 0, kind: input, shape index: {}]
  %s1 = inlined_call_operand.vmem [shape: f32[64,4], index: 1, kind: input, shape index: {}]
  %s2 = inlined_call_operand.vmem [shape: f32[64,1], index: 2, kind: input, shape index: {}]
  %s3 = inlined_call_operand.vmem [shape: f32[128,64], index: 3, kind: input, shape index: {}]
  %s4 = inlined_call_operand.vmem [shape: f32[2,128,1], index: 4, kind: output, shape index: {0}]
  %s5 = inlined_call_operand.vmem [shape: f32[2,128,1], index: 5, kind: output, shape index: {1}]
  %6 = xla_tuple %s4, %s5
  %s7 = sld [smem:[#allocation0]]
  $region61: #{tpu_custom_call.1} parent=0
    _
  %s9 = ssub.s32 1, %s7
  %s10 = scalar_select 0, %s9, %s7
  loop: start=0, step=1, limit=4
  $region2: #{tpu_custom_call.1} parent=0 // loop_pre_header
    _
  $region3: #{tpu_custom_call.1} parent=0 // loop_header
    %s12 = sphi 0, %s16
    %p13 = scmp.ge.s32.totalorder %s12, 4
    %s19 = sphi 0, %s31
    %s20 = sphi 0, %s27
    %s21 = sphi 0, %s19
    %s22 = sphi 0, %s20
    %s23 = sphi 0, %s21
    %s24 = sphi 0, %s22
    %s36 = sphi 0, %s38
    %s39 = sphi 0, %s36
    %s40 = sphi 0, %s39
    %s56 = sphi 0, %s40
    %s60 = sphi 0, %s60
    %s62 = sphi 0, %s60
    %s63 = sphi 0, %s62
    %s77 = sphi 0, %s63
    %s81 = sphi 0, %s81
    %s83 = sphi 0, %s81
    %s84 = sphi 0, %s83
    %s98 = sphi 0, %s84
    %s102 = sphi 0, %s102
    %s104 = sphi 0, %s102
    %s105 = sphi 0, %s104
    %s119 = sphi 0, %s105
    %s125 = sphi 0, %s127
    %s128 = sphi 0, %s125
    %s129 = sphi 0, %s128
    %s145 = sphi 0, %s129
    %s151 = sphi 0, %s153
    %s154 = sphi 0, %s151
    %s155 = sphi 0, %s154
    %s171 = sphi 0, %s155
  $region4: #{tpu_custom_call.1} parent=0 // loop_header_branch
    %15 = sbr.rel (%p13) target = $region8
  $region5: #{tpu_custom_call.1} parent=0 // loop_body
    %s17 = ssub.s32 %s12, 1
    %s18 = ssub.s32 %s12, 2
    %s25 = sadd.s32 1, %s20
    %p26 = scmp.ge.s32.totalorder %s25, 1
    %s27 = scalar_select %p26, 0, %s25
    %s28 = sadd.s32 1, %s19
    %s29 = scalar_select %p26, %s28, %s19
    %p30 = scmp.ge.s32.totalorder %s29, 2
    %s31 = scalar_select %p30, 0, %s29
    %s32 = sadd.s32 %s19, %s20
    %s33 = sadd.s32 %s31, %s27
    %s34 = ssub.s32 %s32, %s33
    %p35 = scmp.eq.s32.totalorder %s34, 0
    %s37 = sadd.s32 %s36, 1
    %s38 = scalar_select %p35, %s36, %s37
    %p41 = pneg %p35
    %p42 = scmp.eq.s32.totalorder %s12, 1
    %p43 = por %p41, %p42
    %p44 = scmp.ne.s32.totalorder %s36, %s39
    %p45 = scmp.eq.s32.totalorder %s12, 0
    %p46 = por %p44, %p45
    %p47 = scmp.ne.s32.totalorder %s36, %s39
    %p48 = scmp.eq.s32.totalorder %s17, 1
    %p49 = por %p47, %p48
    %p50 = scmp.ne.s32.totalorder %s39, %s40
    %p51 = scmp.eq.s32.totalorder %s17, 0
    %p52 = por %p50, %p51
    %p53 = scmp.ne.s32.totalorder %s39, %s40
    %p54 = scmp.eq.s32.totalorder %s18, 1
    %p55 = por %p53, %p54
    %p57 = scmp.ne.s32.totalorder %s40, %s56
    %p58 = scmp.eq.s32.totalorder %s18, 0
    %p59 = por %p57, %p58
    %s61 = sadd.s32 %s60, 1
    %p64 = scmp.eq.s32.totalorder %s12, 1
    %p65 = scmp.ne.s32.totalorder %s60, %s62
    %p66 = scmp.eq.s32.totalorder %s12, 0
    %p67 = por %p65, %p66
    %p68 = scmp.ne.s32.totalorder %s60, %s62
    %p69 = scmp.eq.s32.totalorder %s17, 1
    %p70 = por %p68, %p69
    %p71 = scmp.ne.s32.totalorder %s62, %s63
    %p72 = scmp.eq.s32.totalorder %s17, 0
    %p73 = por %p71, %p72
    %p74 = scmp.ne.s32.totalorder %s62, %s63
    %p75 = scmp.eq.s32.totalorder %s18, 1
    %p76 = por %p74, %p75
    %p78 = scmp.ne.s32.totalorder %s63, %s77
    %p79 = scmp.eq.s32.totalorder %s18, 0
    %p80 = por %p78, %p79
    %s82 = sadd.s32 %s81, 1
    %p85 = scmp.eq.s32.totalorder %s12, 1
    %p86 = scmp.ne.s32.totalorder %s81, %s83
    %p87 = scmp.eq.s32.totalorder %s12, 0
    %p88 = por %p86, %p87
    %p89 = scmp.ne.s32.totalorder %s81, %s83
    %p90 = scmp.eq.s32.totalorder %s17, 1
    %p91 = por %p89, %p90
    %p92 = scmp.ne.s32.totalorder %s83, %s84
    %p93 = scmp.eq.s32.totalorder %s17, 0
    %p94 = por %p92, %p93
    %p95 = scmp.ne.s32.totalorder %s83, %s84
    %p96 = scmp.eq.s32.totalorder %s18, 1
    %p97 = por %p95, %p96
    %p99 = scmp.ne.s32.totalorder %s84, %s98
    %p100 = scmp.eq.s32.totalorder %s18, 0
    %p101 = por %p99, %p100
    %s103 = sadd.s32 %s102, 1
    %p106 = scmp.eq.s32.totalorder %s12, 1
    %p107 = scmp.ne.s32.totalorder %s102, %s104
    %p108 = scmp.eq.s32.totalorder %s12, 0
    %p109 = por %p107, %p108
    %p110 = scmp.ne.s32.totalorder %s102, %s104
    %p111 = scmp.eq.s32.totalorder %s17, 1
    %p112 = por %p110, %p111
    %p113 = scmp.ne.s32.totalorder %s104, %s105
    %p114 = scmp.eq.s32.totalorder %s17, 0
    %p115 = por %p113, %p114
    %p116 = scmp.ne.s32.totalorder %s104, %s105
    %p117 = scmp.eq.s32.totalorder %s18, 1
    %p118 = por %p116, %p117
    %p120 = scmp.ne.s32.totalorder %s105, %s119
    %p121 = scmp.eq.s32.totalorder %s18, 0
    %p122 = por %p120, %p121
    %s123 = ssub.s32 %s19, %s31
    %p124 = scmp.eq.s32.totalorder %s123, 0
    %s126 = sadd.s32 %s125, 1
    %s127 = scalar_select %p124, %s125, %s126
    %p130 = pneg %p124
    %p131 = scmp.eq.s32.totalorder %s12, 1
    %p132 = por %p130, %p131
    %p133 = scmp.ne.s32.totalorder %s125, %s128
    %p134 = scmp.eq.s32.totalorder %s12, 0
    %p135 = por %p133, %p134
    %p136 = scmp.ne.s32.totalorder %s125, %s128
    %p137 = scmp.eq.s32.totalorder %s17, 1
    %p138 = por %p136, %p137
    %p139 = scmp.ne.s32.totalorder %s128, %s129
    %p140 = scmp.eq.s32.totalorder %s17, 0
    %p141 = por %p139, %p140
    %p142 = scmp.ne.s32.totalorder %s128, %s129
    %p143 = scmp.eq.s32.totalorder %s18, 1
    %p144 = por %p142, %p143
    %p146 = scmp.ne.s32.totalorder %s129, %s145
    %p147 = scmp.eq.s32.totalorder %s18, 0
    %p148 = por %p146, %p147
    %s149 = ssub.s32 %s19, %s31
    %p150 = scmp.eq.s32.totalorder %s149, 0
    %s152 = sadd.s32 %s151, 1
    %s153 = scalar_select %p150, %s151, %s152
    %p156 = pneg %p150
    %p157 = scmp.eq.s32.totalorder %s12, 1
    %p158 = por %p156, %p157
    %p159 = scmp.ne.s32.totalorder %s151, %s154
    %p160 = scmp.eq.s32.totalorder %s12, 0
    %p161 = por %p159, %p160
    %p162 = scmp.ne.s32.totalorder %s151, %s154
    %p163 = scmp.eq.s32.totalorder %s17, 1
    %p164 = por %p162, %p163
    %p165 = scmp.ne.s32.totalorder %s154, %s155
    %p166 = scmp.eq.s32.totalorder %s17, 0
    %p167 = por %p165, %p166
    %p168 = scmp.ne.s32.totalorder %s154, %s155
    %p169 = scmp.eq.s32.totalorder %s18, 1
    %p170 = por %p168, %p169
    %p172 = scmp.ne.s32.totalorder %s155, %s171
    %p173 = scmp.eq.s32.totalorder %s18, 0
    %p174 = por %p172, %p173
    %p175 = scmp.le.s32.totalorder 1, %s12
    %p176 = scmp.lt.s32.totalorder %s12, 3
    %p177 = pnand %p175, %p176
    %p178 = pneg %p177
    // Predicated region
    $region9: #{tpu_custom_call.1} parent=5 // pred_check
      _
    $region10: #{tpu_custom_call.1} parent=5 // pred_check_branch
      %180 = sbr.rel (%p177) target = $region12
    $region11: #{tpu_custom_call.1} parent=5 // pred_region
      %s181 = ssub.s32 %s12, 1
      // Predicated region
      $region13: #{tpu_custom_call.1} parent=11 // pred_check
        %p182 = pneg %p73
      $region14: #{tpu_custom_call.1} parent=11 // pred_check_branch
        %184 = sbr.rel (%p182) target = $region16
      $region15: #{tpu_custom_call.1} parent=11 // pred_region
        _
      $region16: #{tpu_custom_call.1} parent=11 // pred_fallthru
        _
      // Predicated region
      $region17: #{tpu_custom_call.1} parent=11 // pred_check
        %p185 = pneg %p94
      $region18: #{tpu_custom_call.1} parent=11 // pred_check_branch
        %187 = sbr.rel (%p185) target = $region20
      $region19: #{tpu_custom_call.1} parent=11 // pred_region
        _
      $region20: #{tpu_custom_call.1} parent=11 // pred_fallthru
        _
      // Predicated region
      $region21: #{tpu_custom_call.1} parent=11 // pred_check
        %p188 = pneg %p115
      $region22: #{tpu_custom_call.1} parent=11 // pred_check_branch
        %190 = sbr.rel (%p188) target = $region24
      $region23: #{tpu_custom_call.1} parent=11 // pred_region
        _
      $region24: #{tpu_custom_call.1} parent=11 // pred_fallthru
        _
    $region12: #{tpu_custom_call.1} parent=5 // pred_fallthru
      _
    %p191 = scmp.lt.s32.totalorder %s12, 2
    // Predicated region
    $region25: #{tpu_custom_call.1} parent=5 // pred_check
      %p192 = pneg %p191
    $region26: #{tpu_custom_call.1} parent=5 // pred_check_branch
      %194 = sbr.rel (%p192) target = $region28
    $region27: #{tpu_custom_call.1} parent=5 // pred_region
      // Predicated region
      $region29: #{tpu_custom_call.1} parent=27 // pred_check
        %p195 = pneg %p46
      $region30: #{tpu_custom_call.1} parent=27 // pred_check_branch
        %197 = sbr.rel (%p195) target = $region32
      $region31: #{tpu_custom_call.1} parent=27 // pred_region
        %s198 = sadd.s32 %s19, %s20
        %s199 = smul.u32 4, %s198
        %p200 = scmp.lt.s32.totalorder %s199, 7
        %s201 = scalar_select %p200, %s199, 7
        %s202 = smul.addr %s201, 4
        %s203 = scalar_lea.vmem %s0, %s202
        %s204 = sadd.s32 %s19, %s20
        %s205 = smul.u32 4, %s204
      $region32: #{tpu_custom_call.1} parent=27 // pred_fallthru
        _
    $region28: #{tpu_custom_call.1} parent=5 // pred_fallthru
      _
    %p206 = scmp.le.s32.totalorder 1, %s12
    %p207 = scmp.lt.s32.totalorder %s12, 3
    %p208 = pnand %p206, %p207
    %p209 = pneg %p208
    // Predicated region
    $region33: #{tpu_custom_call.1} parent=5 // pred_check
      _
    $region34: #{tpu_custom_call.1} parent=5 // pred_check_branch
      %211 = sbr.rel (%p208) target = $region36
    $region35: #{tpu_custom_call.1} parent=5 // pred_region
      %s212 = ssub.s32 %s12, 1
      %s213 = sadd.s32 %s21, %s22
      %s214 = smul.u32 4, %s213
      %p215 = scmp.lt.s32.totalorder %s214, 7
      %s216 = scalar_select %p215, %s214, 7
      %s217 = smul.addr %s216, 4
      %s218 = scalar_lea.vmem %s0, %s217
      %p219 = pneg %p52
      %p220 = pneg %p49
      %p221 = pneg %p73
      %p222 = pneg %p70
      %p223 = pneg %p94
      %p224 = pneg %p91
      %p225 = pneg %p115
      %p226 = pneg %p112
      %p227 = pneg %p141
      %p228 = pneg %p138
      %p229 = scmp.lt.s32.totalorder %s21, 1
      %s230 = scalar_select %p229, %s21, 1
      %s231 = smul.addr %s230, 16
      %s232 = smul.addr %s231, 8
      %s233 = scalar_lea.vmem %s4, %s232
      %p234 = pneg %p167
      %p235 = pneg %p164
      %p236 = scmp.lt.s32.totalorder %s21, 1
      %s237 = scalar_select %p236, %s21, 1
      %s238 = smul.addr %s237, 16
      %s239 = smul.addr %s238, 8
      %s240 = scalar_lea.vmem %s5, %s239
      %s241 = sadd.s32 %s21, %s22
      %s242 = smul.u32 4, %s241
      %p243 = scmp.lt.s32.totalorder %s242, 7
      %s244 = scalar_select %p243, %s242, 7
      %s245 = smul.addr %s244, 4
      %s246 = scalar_lea.vmem %s0, %s245
      %s247 = sadd.s32 %s21, %s22
      %s248 = smul.u32 4, %s247
      %p249 = scmp.lt.s32.totalorder %s21, 1
      %s250 = scalar_select %p249, %s21, 1
      %s251 = smul.addr %s250, 16
      %s252 = smul.addr %s251, 8
      %s253 = scalar_lea.vmem %s4, %s252
      %p254 = scmp.lt.s32.totalorder %s21, 1
      %s255 = scalar_select %p254, %s21, 1
      %s256 = smul.addr %s255, 16
      %s257 = smul.addr %s256, 8
      %s258 = scalar_lea.vmem %s5, %s257
      %p259 = scmp.eq.s32.totalorder %s22, 0
      // Predicated region
      $region37: #{tpu_custom_call.1} parent=35 // pred_check
        %p260 = pneg %p259
      $region38: #{tpu_custom_call.1} parent=35 // pred_check_branch
        %262 = sbr.rel (%p260) target = $region40
      $region39: #{tpu_custom_call.1} parent=35 // pred_region
        %vm263 = vcmask 7168
        %264 = vst.msk [vmem:[%s253] sm:$0xff] %vm263, 0.0
        %265 = vst.msk [vmem:[%s253 + $0x8] sm:$0xff] %vm263, 0.0
        %266 = vst.msk [vmem:[%s253 + $0x10] sm:$0xff] %vm263, 0.0
        %267 = vst.msk [vmem:[%s253 + $0x18] sm:$0xff] %vm263, 0.0
        %268 = vst.msk [vmem:[%s253 + $0x20] sm:$0xff] %vm263, 0.0
        %269 = vst.msk [vmem:[%s253 + $0x28] sm:$0xff] %vm263, 0.0
        %270 = vst.msk [vmem:[%s253 + $0x30] sm:$0xff] %vm263, 0.0
        %271 = vst.msk [vmem:[%s253 + $0x38] sm:$0xff] %vm263, 0.0
        %272 = vst.msk [vmem:[%s253 + $0x40] sm:$0xff] %vm263, 0.0
        %273 = vst.msk [vmem:[%s253 + $0x48] sm:$0xff] %vm263, 0.0
        %274 = vst.msk [vmem:[%s253 + $0x50] sm:$0xff] %vm263, 0.0
        %275 = vst.msk [vmem:[%s253 + $0x58] sm:$0xff] %vm263, 0.0
        %276 = vst.msk [vmem:[%s253 + $0x60] sm:$0xff] %vm263, 0.0
        %277 = vst.msk [vmem:[%s253 + $0x68] sm:$0xff] %vm263, 0.0
        %278 = vst.msk [vmem:[%s253 + $0x70] sm:$0xff] %vm263, 0.0
        %279 = vst.msk [vmem:[%s253 + $0x78] sm:$0xff] %vm263, 0.0
        %280 = vst.msk [vmem:[%s258] sm:$0xff] %vm263, 0.0
        %281 = vst.msk [vmem:[%s258 + $0x8] sm:$0xff] %vm263, 0.0
        %282 = vst.msk [vmem:[%s258 + $0x10] sm:$0xff] %vm263, 0.0
        %283 = vst.msk [vmem:[%s258 + $0x18] sm:$0xff] %vm263, 0.0
        %284 = vst.msk [vmem:[%s258 + $0x20] sm:$0xff] %vm263, 0.0
        %285 = vst.msk [vmem:[%s258 + $0x28] sm:$0xff] %vm263, 0.0
        %286 = vst.msk [vmem:[%s258 + $0x30] sm:$0xff] %vm263, 0.0
        %287 = vst.msk [vmem:[%s258 + $0x38] sm:$0xff] %vm263, 0.0
        %288 = vst.msk [vmem:[%s258 + $0x40] sm:$0xff] %vm263, 0.0
        %289 = vst.msk [vmem:[%s258 + $0x48] sm:$0xff] %vm263, 0.0
        %290 = vst.msk [vmem:[%s258 + $0x50] sm:$0xff] %vm263, 0.0
        %291 = vst.msk [vmem:[%s258 + $0x58] sm:$0xff] %vm263, 0.0
        %292 = vst.msk [vmem:[%s258 + $0x60] sm:$0xff] %vm263, 0.0
        %293 = vst.msk [vmem:[%s258 + $0x68] sm:$0xff] %vm263, 0.0
        %294 = vst.msk [vmem:[%s258 + $0x70] sm:$0xff] %vm263, 0.0
        %295 = vst.msk [vmem:[%s258 + $0x78] sm:$0xff] %vm263, 0.0
      $region40: #{tpu_custom_call.1} parent=35 // pred_fallthru
        _
      %v296 = vld [vmem:[%s246] sm:$0xff]
      %v297 = vld [vmem:[%s246 + $0x8] sm:$0xff]
      %v298 = vld [vmem:[%s1] sm:$0xff]
      %v299 = vld [vmem:[%s1 + $0x8] sm:$0xff]
      %v300 = vld [vmem:[%s1 + $0x10] sm:$0xff]
      %v301 = vld [vmem:[%s1 + $0x18] sm:$0xff]
      %v302 = vld [vmem:[%s1 + $0x20] sm:$0xff]
      %v303 = vld [vmem:[%s1 + $0x28] sm:$0xff]
      %v304 = vld [vmem:[%s1 + $0x30] sm:$0xff]
      %v305 = vld [vmem:[%s1 + $0x38] sm:$0xff]
      %v306 = vld [vmem:[%s2] sm:$0xff]
      %v307 = vld [vmem:[%s2 + $0x8] sm:$0xff]
      %v308 = vld [vmem:[%s2 + $0x10] sm:$0xff]
      %v309 = vld [vmem:[%s2 + $0x18] sm:$0xff]
      %v310 = vld [vmem:[%s2 + $0x20] sm:$0xff]
      %v311 = vld [vmem:[%s2 + $0x28] sm:$0xff]
      %v312 = vld [vmem:[%s2 + $0x30] sm:$0xff]
      %v313 = vld [vmem:[%s2 + $0x38] sm:$0xff]
      %v314 = vld [vmem:[%s3] sm:$0xff]
      %v315 = vld [vmem:[%s3 + $0x8] sm:$0xff]
      %v316 = vld [vmem:[%s3 + $0x10] sm:$0xff]
      %v317 = vld [vmem:[%s3 + $0x18] sm:$0xff]
      %v318 = vld [vmem:[%s3 + $0x20] sm:$0xff]
      %v319 = vld [vmem:[%s3 + $0x28] sm:$0xff]
      %v320 = vld [vmem:[%s3 + $0x30] sm:$0xff]
      %v321 = vld [vmem:[%s3 + $0x38] sm:$0xff]
      %v322 = vld [vmem:[%s3 + $0x40] sm:$0xff]
      %v323 = vld [vmem:[%s3 + $0x48] sm:$0xff]
      %v324 = vld [vmem:[%s3 + $0x50] sm:$0xff]
      %v325 = vld [vmem:[%s3 + $0x58] sm:$0xff]
      %v326 = vld [vmem:[%s3 + $0x60] sm:$0xff]
      %v327 = vld [vmem:[%s3 + $0x68] sm:$0xff]
      %v328 = vld [vmem:[%s3 + $0x70] sm:$0xff]
      %v329 = vld [vmem:[%s3 + $0x78] sm:$0xff]
      %331 = vset.pattern.permute.xlu0 0
      %332 = vperm.xlu0 %331, %v306
      %v333 = vpop.permute.xlu0 %332
      %336 = vset.pattern.permute.xlu0 0
      %337 = vperm.xlu0 %336, %v307
      %v338 = vpop.permute.xlu0 %337
      %341 = vset.pattern.permute.xlu0 0
      %342 = vperm.xlu0 %341, %v308
      %v343 = vpop.permute.xlu0 %342
      %346 = vset.pattern.permute.xlu0 0
      %347 = vperm.xlu0 %346, %v309
      %v348 = vpop.permute.xlu0 %347
      %351 = vset.pattern.permute.xlu0 0
      %352 = vperm.xlu0 %351, %v310
      %v353 = vpop.permute.xlu0 %352
      %356 = vset.pattern.permute.xlu0 0
      %357 = vperm.xlu0 %356, %v311
      %v358 = vpop.permute.xlu0 %357
      %361 = vset.pattern.permute.xlu0 0
      %362 = vperm.xlu0 %361, %v312
      %v363 = vpop.permute.xlu0 %362
      %366 = vset.pattern.permute.xlu0 0
      %367 = vperm.xlu0 %366, %v313
      %v368 = vpop.permute.xlu0 %367
      %v372 = vcombine.high %v296, %v296
      %v373 = vcombine.high %v297, %v297
      %vm374 = vcmask 31744
      %v376 = vsel %vm374, %v298, 0
      %v379 = vsel %vm374, %v299, 0
      %v382 = vsel %vm374, %v300, 0
      %v385 = vsel %vm374, %v301, 0
      %v388 = vsel %vm374, %v302, 0
      %v391 = vsel %vm374, %v303, 0
      %v394 = vsel %vm374, %v304, 0
      %v397 = vsel %vm374, %v305, 0
      %vm399 = vcmask 1043456
      %v400 = vsel %vm399, %v296, 0
      %v402 = vsel %vm399, %v372, 0
      %v404 = vsel %vm399, %v297, 0
      %v406 = vsel %vm399, %v373, 0
      %408 = vmatprep.subr.mxu0 %v402
      %409 = vmatpush1.msra.mxu0 %v400
      %410 = vmatprep.subr.mxu0 0.0
      %411 = vmatpush1.msra.mxu0 0.0
      %412 = vmatprep.subr.mxu0 0.0
      %413 = vmatpush1.msra.mxu0 0.0
      %414 = vmatprep.subr.mxu0 0.0
      %415 = vmatpush1.msra.mxu0 0.0
      %416 = vmatprep.subr.mxu0 0.0
      %417 = vmatpush1.msra.mxu0 0.0
      %418 = vmatprep.subr.mxu0 0.0
      %419 = vmatpush1.msra.mxu0 0.0
      %420 = vmatprep.subr.mxu0 0.0
      %421 = vmatpush1.msra.mxu0 0.0
      %422 = vmatprep.subr.mxu0 0.0
      %423 = vmatpush1.msra.mxu0 0.0
      %424 = vmatprep.subr.mxu0 0.0
      %425 = vmatpush1.msra.mxu0 0.0
      %426 = vmatprep.subr.mxu0 0.0
      %427 = vmatpush1.msra.mxu0 0.0
      %428 = vmatprep.subr.mxu0 0.0
      %429 = vmatpush1.msra.mxu0 0.0
      %430 = vmatprep.subr.mxu0 0.0
      %431 = vmatpush1.msra.mxu0 0.0
      %432 = vmatprep.subr.mxu0 0.0
      %433 = vmatpush1.msra.mxu0 0.0
      %434 = vmatprep.subr.mxu0 0.0
      %435 = vmatpush1.msra.mxu0 0.0
      %436 = vmatprep.subr.mxu0 0.0
      %437 = vmatpush1.msra.mxu0 0.0
      %438 = vmatprep.subr.mxu0 0.0
      %439 = vmatpush1.msra.mxu0 0.0
      %440 = vmatprep.subr.mxu0 0.0
      %441 = vmatpush1.msra.mxu0 0.0
      %442 = vmatprep.subr.mxu0 0.0
      %443 = vmatpush1.msra.mxu0 0.0
      %444 = vmatprep.subr.mxu0 0.0
      %445 = vmatpush1.msra.mxu0 0.0
      %446 = vmatprep.subr.mxu0 0.0
      %447 = vmatpush1.msra.mxu0 0.0
      %448 = vmatprep.subr.mxu0 0.0
      %449 = vmatpush1.msra.mxu0 0.0
      %450 = vmatprep.subr.mxu0 0.0
      %451 = vmatpush1.msra.mxu0 0.0
      %452 = vmatprep.subr.mxu0 0.0
      %453 = vmatpush1.msra.mxu0 0.0
      %454 = vmatprep.subr.mxu0 0.0
      %455 = vmatpush1.msra.mxu0 0.0
      %456 = vmatprep.subr.mxu0 0.0
      %457 = vmatpush1.msra.mxu0 0.0
      %458 = vmatprep.subr.mxu0 0.0
      %459 = vmatpush1.msra.mxu0 0.0
      %460 = vmatprep.subr.mxu0 0.0
      %461 = vmatpush1.msra.mxu0 0.0
      %462 = vmatprep.subr.mxu0 0.0
      %463 = vmatpush1.msra.mxu0 0.0
      %464 = vmatprep.subr.mxu0 0.0
      %465 = vmatpush1.msra.mxu0 0.0
      %466 = vmatprep.subr.mxu0 0.0
      %467 = vmatpush1.msra.mxu0 0.0
      %468 = vmatprep.subr.mxu0 0.0
      %469 = vmatpush1.msra.mxu0 0.0
      %470 = vmatprep.subr.mxu0 0.0
      %471 = vmatpush1.msra.mxu0 0.0
      %472 = vmatprep.mubr.f32.mxu0 0.0
      %473 = vmatmul.mubr.f32.gmra.mrb[0].mxu0 %v376
      %v474 = vpop.f32.mrb[0].mxu0
      %v475 = vadd.f32 %v333, %v474
      %v476 = vpop.f32.mrb[0].mxu0
      %v477 = vadd.f32 %v333, %v476
      %478 = vmatprep.mubr.f32.mxu0 0.0
      %479 = vmatmul.mubr.f32.gmra.mrb[0].mxu0 %v379
      %v480 = vpop.f32.mrb[0].mxu0
      %v481 = vadd.f32 %v338, %v480
      %v482 = vpop.f32.mrb[0].mxu0
      %v483 = vadd.f32 %v338, %v482
      %484 = vmatprep.mubr.f32.mxu0 0.0
      %485 = vmatmul.mubr.f32.gmra.mrb[0].mxu0 %v382
      %v486 = vpop.f32.mrb[0].mxu0
      %v487 = vadd.f32 %v343, %v486
      %v488 = vpop.f32.mrb[0].mxu0
      %v489 = vadd.f32 %v343, %v488
      %490 = vmatprep.mubr.f32.mxu0 0.0
      %491 = vmatmul.mubr.f32.gmra.mrb[0].mxu0 %v385
      %v492 = vpop.f32.mrb[0].mxu0
      %v493 = vadd.f32 %v348, %v492
      %v494 = vpop.f32.mrb[0].mxu0
      %v495 = vadd.f32 %v348, %v494
      %496 = vmatprep.mubr.f32.mxu0 0.0
      %497 = vmatmul.mubr.f32.gmra.mrb[0].mxu0 %v388
      %v498 = vpop.f32.mrb[0].mxu0
      %v499 = vadd.f32 %v353, %v498
      %v500 = vpop.f32.mrb[0].mxu0
      %v501 = vadd.f32 %v353, %v500
      %502 = vmatprep.mubr.f32.mxu0 0.0
      %503 = vmatmul.mubr.f32.gmra.mrb[0].mxu0 %v391
      %v504 = vpop.f32.mrb[0].mxu0
      %v505 = vadd.f32 %v358, %v504
      %v506 = vpop.f32.mrb[0].mxu0
      %v507 = vadd.f32 %v358, %v506
      %508 = vmatprep.mubr.f32.mxu0 0.0
      %509 = vmatmul.mubr.f32.gmra.mrb[0].mxu0 %v394
      %v510 = vpop.f32.mrb[0].mxu0
      %v511 = vadd.f32 %v363, %v510
      %v512 = vpop.f32.mrb[0].mxu0
      %v513 = vadd.f32 %v363, %v512
      %514 = vmatprep.mubr.f32.mxu0 0.0
      %515 = vmatmul.mubr.f32.gmra.mrb[0].mxu0 %v397
      %v516 = vpop.f32.mrb[0].mxu0
      %v517 = vadd.f32 %v368, %v516
      %v518 = vpop.f32.mrb[0].mxu0
      %v519 = vadd.f32 %v368, %v518
      %520 = vdwg.mxu0
      %521 = vmatprep.subr.mxu0 %v406
      %522 = vmatpush1.msra.mxu0 %v404
      %523 = vmatprep.subr.mxu0 0.0
      %524 = vmatpush1.msra.mxu0 0.0
      %525 = vmatprep.subr.mxu0 0.0
      %526 = vmatpush1.msra.mxu0 0.0
      %527 = vmatprep.subr.mxu0 0.0
      %528 = vmatpush1.msra.mxu0 0.0
      %529 = vmatprep.subr.mxu0 0.0
      %530 = vmatpush1.msra.mxu0 0.0
      %531 = vmatprep.subr.mxu0 0.0
      %532 = vmatpush1.msra.mxu0 0.0
      %533 = vmatprep.subr.mxu0 0.0
      %534 = vmatpush1.msra.mxu0 0.0
      %535 = vmatprep.subr.mxu0 0.0
      %536 = vmatpush1.msra.mxu0 0.0
      %537 = vmatprep.subr.mxu0 0.0
      %538 = vmatpush1.msra.mxu0 0.0
      %539 = vmatprep.subr.mxu0 0.0
      %540 = vmatpush1.msra.mxu0 0.0
      %541 = vmatprep.subr.mxu0 0.0
      %542 = vmatpush1.msra.mxu0 0.0
      %543 = vmatprep.subr.mxu0 0.0
      %544 = vmatpush1.msra.mxu0 0.0
      %545 = vmatprep.subr.mxu0 0.0
      %546 = vmatpush1.msra.mxu0 0.0
      %547 = vmatprep.subr.mxu0 0.0
      %548 = vmatpush1.msra.mxu0 0.0
      %549 = vmatprep.subr.mxu0 0.0
      %550 = vmatpush1.msra.mxu0 0.0
      %551 = vmatprep.subr.mxu0 0.0
      %552 = vmatpush1.msra.mxu0 0.0
      %553 = vmatprep.subr.mxu0 0.0
      %554 = vmatpush1.msra.mxu0 0.0
      %555 = vmatprep.subr.mxu0 0.0
      %556 = vmatpush1.msra.mxu0 0.0
      %557 = vmatprep.subr.mxu0 0.0
      %558 = vmatpush1.msra.mxu0 0.0
      %559 = vmatprep.subr.mxu0 0.0
      %560 = vmatpush1.msra.mxu0 0.0
      %561 = vmatprep.subr.mxu0 0.0
      %562 = vmatpush1.msra.mxu0 0.0
      %563 = vmatprep.subr.mxu0 0.0
      %564 = vmatpush1.msra.mxu0 0.0
      %565 = vmatprep.subr.mxu0 0.0
      %566 = vmatpush1.msra.mxu0 0.0
      %567 = vmatprep.subr.mxu0 0.0
      %568 = vmatpush1.msra.mxu0 0.0
      %569 = vmatprep.subr.mxu0 0.0
      %570 = vmatpush1.msra.mxu0 0.0
      %571 = vmatprep.subr.mxu0 0.0
      %572 = vmatpush1.msra.mxu0 0.0
      %573 = vmatprep.subr.mxu0 0.0
      %574 = vmatpush1.msra.mxu0 0.0
      %575 = vmatprep.subr.mxu0 0.0
      %576 = vmatpush1.msra.mxu0 0.0
      %577 = vmatprep.subr.mxu0 0.0
      %578 = vmatpush1.msra.mxu0 0.0
      %579 = vmatprep.subr.mxu0 0.0
      %580 = vmatpush1.msra.mxu0 0.0
      %581 = vmatprep.subr.mxu0 0.0
      %582 = vmatpush1.msra.mxu0 0.0
      %583 = vmatprep.subr.mxu0 0.0
      %584 = vmatpush1.msra.mxu0 0.0
      %585 = vmatprep.mubr.f32.mxu0 0.0
      %586 = vmatmul.mubr.f32.gmra.mrb[0].mxu0 %v376
      %v587 = vpop.f32.mrb[0].mxu0
      %v588 = vadd.f32 %v333, %v587
      %v589 = vpop.f32.mrb[0].mxu0
      %v590 = vadd.f32 %v333, %v589
      %591 = vmatprep.mubr.f32.mxu0 0.0
      %592 = vmatmul.mubr.f32.gmra.mrb[0].mxu0 %v379
      %v593 = vpop.f32.mrb[0].mxu0
      %v594 = vadd.f32 %v338, %v593
      %v595 = vpop.f32.mrb[0].mxu0
      %v596 = vadd.f32 %v338, %v595
      %597 = vmatprep.mubr.f32.mxu0 0.0
      %598 = vmatmul.mubr.f32.gmra.mrb[0].mxu0 %v382
      %v599 = vpop.f32.mrb[0].mxu0
      %v600 = vadd.f32 %v343, %v599
      %v601 = vpop.f32.mrb[0].mxu0
      %v602 = vadd.f32 %v343, %v601
      %603 = vmatprep.mubr.f32.mxu0 0.0
      %604 = vmatmul.mubr.f32.gmra.mrb[0].mxu0 %v385
      %v605 = vpop.f32.mrb[0].mxu0
      %v606 = vadd.f32 %v348, %v605
      %v607 = vpop.f32.mrb[0].mxu0
      %v608 = vadd.f32 %v348, %v607
      %609 = vmatprep.mubr.f32.mxu0 0.0
      %610 = vmatmul.mubr.f32.gmra.mrb[0].mxu0 %v388
      %v611 = vpop.f32.mrb[0].mxu0
      %v612 = vadd.f32 %v353, %v611
      %v613 = vpop.f32.mrb[0].mxu0
      %v614 = vadd.f32 %v353, %v613
      %615 = vmatprep.mubr.f32.mxu0 0.0
      %616 = vmatmul.mubr.f32.gmra.mrb[0].mxu0 %v391
      %v617 = vpop.f32.mrb[0].mxu0
      %v618 = vadd.f32 %v358, %v617
      %v619 = vpop.f32.mrb[0].mxu0
      %v620 = vadd.f32 %v358, %v619
      %621 = vmatprep.mubr.f32.mxu0 0.0
      %622 = vmatmul.mubr.f32.gmra.mrb[0].mxu0 %v394
      %v623 = vpop.f32.mrb[0].mxu0
      %v624 = vadd.f32 %v363, %v623
      %v625 = vpop.f32.mrb[0].mxu0
      %v626 = vadd.f32 %v363, %v625
      %627 = vmatprep.mubr.f32.mxu0 0.0
      %628 = vmatmul.mubr.f32.gmra.mrb[0].mxu0 %v397
      %v629 = vpop.f32.mrb[0].mxu0
      %v630 = vadd.f32 %v368, %v629
      %v631 = vpop.f32.mrb[0].mxu0
      %v632 = vadd.f32 %v368, %v631
      %633 = vdwg.mxu0
      %vm634 = vcmp.ge.f32.partialorder %v475, 0.0
      %vm635 = vcmp.ge.f32.partialorder %v477, 0.0
      %vm636 = vcmp.ge.f32.partialorder %v588, 0.0
      %vm637 = vcmp.ge.f32.partialorder %v590, 0.0
      %vm638 = vcmp.ge.f32.partialorder %v481, 0.0
      %vm639 = vcmp.ge.f32.partialorder %v483, 0.0
      %vm640 = vcmp.ge.f32.partialorder %v594, 0.0
      %vm641 = vcmp.ge.f32.partialorder %v596, 0.0
      %vm642 = vcmp.ge.f32.partialorder %v487, 0.0
      %vm643 = vcmp.ge.f32.partialorder %v489, 0.0
      %vm644 = vcmp.ge.f32.partialorder %v600, 0.0
      %vm645 = vcmp.ge.f32.partialorder %v602, 0.0
      %vm646 = vcmp.ge.f32.partialorder %v493, 0.0
      %vm647 = vcmp.ge.f32.partialorder %v495, 0.0
      %vm648 = vcmp.ge.f32.partialorder %v606, 0.0
      %vm649 = vcmp.ge.f32.partialorder %v608, 0.0
      %vm650 = vcmp.ge.f32.partialorder %v499, 0.0
      %vm651 = vcmp.ge.f32.partialorder %v501, 0.0
      %vm652 = vcmp.ge.f32.partialorder %v612, 0.0
      %vm653 = vcmp.ge.f32.partialorder %v614, 0.0
      %vm654 = vcmp.ge.f32.partialorder %v505, 0.0
      %vm655 = vcmp.ge.f32.partialorder %v507, 0.0
      %vm656 = vcmp.ge.f32.partialorder %v618, 0.0
      %vm657 = vcmp.ge.f32.partialorder %v620, 0.0
      %vm658 = vcmp.ge.f32.partialorder %v511, 0.0
      %vm659 = vcmp.ge.f32.partialorder %v513, 0.0
      %vm660 = vcmp.ge.f32.partialorder %v624, 0.0
      %vm661 = vcmp.ge.f32.partialorder %v626, 0.0
      %vm662 = vcmp.ge.f32.partialorder %v517, 0.0
      %vm663 = vcmp.ge.f32.partialorder %v519, 0.0
      %vm664 = vcmp.ge.f32.partialorder %v630, 0.0
      %vm665 = vcmp.ge.f32.partialorder %v632, 0.0
      %v666 = vmul.f32 %v475, 0.2
      %v667 = vmul.f32 %v477, 0.2
      %v668 = vmul.f32 %v588, 0.2
      %v669 = vmul.f32 %v590, 0.2
      %v670 = vmul.f32 %v481, 0.2
      %v671 = vmul.f32 %v483, 0.2
      %v672 = vmul.f32 %v594, 0.2
      %v673 = vmul.f32 %v596, 0.2
      %v674 = vmul.f32 %v487, 0.2
      %v675 = vmul.f32 %v489, 0.2
      %v676 = vmul.f32 %v600, 0.2
      %v677 = vmul.f32 %v602, 0.2
      %v678 = vmul.f32 %v493, 0.2
      %v679 = vmul.f32 %v495, 0.2
      %v680 = vmul.f32 %v606, 0.2
      %v681 = vmul.f32 %v608, 0.2
      %v682 = vmul.f32 %v499, 0.2
      %v683 = vmul.f32 %v501, 0.2
      %v684 = vmul.f32 %v612, 0.2
      %v685 = vmul.f32 %v614, 0.2
      %v686 = vmul.f32 %v505, 0.2
      %v687 = vmul.f32 %v507, 0.2
      %v688 = vmul.f32 %v618, 0.2
      %v689 = vmul.f32 %v620, 0.2
      %v690 = vmul.f32 %v511, 0.2
      %v691 = vmul.f32 %v513, 0.2
      %v692 = vmul.f32 %v624, 0.2
      %v693 = vmul.f32 %v626, 0.2
      %v694 = vmul.f32 %v517, 0.2
      %v695 = vmul.f32 %v519, 0.2
      %v696 = vmul.f32 %v630, 0.2
      %v697 = vmul.f32 %v632, 0.2
      %v698 = vsel %vm634, %v475, %v666
      %v699 = vsel %vm635, %v477, %v667
      %v700 = vsel %vm636, %v588, %v668
      %v701 = vsel %vm637, %v590, %v669
      %v702 = vsel %vm638, %v481, %v670
      %v703 = vsel %vm639, %v483, %v671
      %v704 = vsel %vm640, %v594, %v672
      %v705 = vsel %vm641, %v596, %v673
      %v706 = vsel %vm642, %v487, %v674
      %v707 = vsel %vm643, %v489, %v675
      %v708 = vsel %vm644, %v600, %v676
      %v709 = vsel %vm645, %v602, %v677
      %v710 = vsel %vm646, %v493, %v678
      %v711 = vsel %vm647, %v495, %v679
      %v712 = vsel %vm648, %v606, %v680
      %v713 = vsel %vm649, %v608, %v681
      %v714 = vsel %vm650, %v499, %v682
      %v715 = vsel %vm651, %v501, %v683
      %v716 = vsel %vm652, %v612, %v684
      %v717 = vsel %vm653, %v614, %v685
      %v718 = vsel %vm654, %v505, %v686
      %v719 = vsel %vm655, %v507, %v687
      %v720 = vsel %vm656, %v618, %v688
      %v721 = vsel %vm657, %v620, %v689
      %v722 = vsel %vm658, %v511, %v690
      %v723 = vsel %vm659, %v513, %v691
      %v724 = vsel %vm660, %v624, %v692
      %v725 = vsel %vm661, %v626, %v693
      %v726 = vsel %vm662, %v517, %v694
      %v727 = vsel %vm663, %v519, %v695
      %v728 = vsel %vm664, %v630, %v696
      %v729 = vsel %vm665, %v632, %v697
      %vm730 = vcmask 523264
      %v732 = vsel %vm730, %v314, 0
      %v735 = vsel %vm730, %v315, 0
      %v738 = vsel %vm730, %v316, 0
      %v741 = vsel %vm730, %v317, 0
      %v744 = vsel %vm730, %v318, 0
      %v747 = vsel %vm730, %v319, 0
      %v750 = vsel %vm730, %v320, 0
      %v753 = vsel %vm730, %v321, 0
      %v756 = vsel %vm730, %v322, 0
      %v759 = vsel %vm730, %v323, 0
      %v762 = vsel %vm730, %v324, 0
      %v765 = vsel %vm730, %v325, 0
      %v768 = vsel %vm730, %v326, 0
      %v771 = vsel %vm730, %v327, 0
      %v774 = vsel %vm730, %v328, 0
      %v777 = vsel %vm730, %v329, 0
      %779 = vmatprep.subr.mxu0 %v699
      %780 = vmatpush1.msra.mxu0 %v698
      %781 = vmatprep.subr.mxu0 %v703
      %782 = vmatpush1.msra.mxu0 %v702
      %783 = vmatprep.subr.mxu0 %v707
      %784 = vmatpush1.msra.mxu0 %v706
      %785 = vmatprep.subr.mxu0 %v711
      %786 = vmatpush1.msra.mxu0 %v710
      %787 = vmatprep.subr.mxu0 %v715
      %788 = vmatpush1.msra.mxu0 %v714
      %789 = vmatprep.subr.mxu0 %v719
      %790 = vmatpush1.msra.mxu0 %v718
      %791 = vmatprep.subr.mxu0 %v723
      %792 = vmatpush1.msra.mxu0 %v722
      %793 = vmatprep.subr.mxu0 %v727
      %794 = vmatpush1.msra.mxu0 %v726
      %795 = vmatprep.subr.mxu0 0.0
      %796 = vmatpush1.msra.mxu0 0.0
      %797 = vmatprep.subr.mxu0 0.0
      %798 = vmatpush1.msra.mxu0 0.0
      %799 = vmatprep.subr.mxu0 0.0
      %800 = vmatpush1.msra.mxu0 0.0
      %801 = vmatprep.subr.mxu0 0.0
      %802 = vmatpush1.msra.mxu0 0.0
      %803 = vmatprep.subr.mxu0 0.0
      %804 = vmatpush1.msra.mxu0 0.0
      %805 = vmatprep.subr.mxu0 0.0
      %806 = vmatpush1.msra.mxu0 0.0
      %807 = vmatprep.subr.mxu0 0.0
      %808 = vmatpush1.msra.mxu0 0.0
      %809 = vmatprep.subr.mxu0 0.0
      %810 = vmatpush1.msra.mxu0 0.0
      %811 = vmatprep.subr.mxu0 0.0
      %812 = vmatpush1.msra.mxu0 0.0
      %813 = vmatprep.subr.mxu0 0.0
      %814 = vmatpush1.msra.mxu0 0.0
      %815 = vmatprep.subr.mxu0 0.0
      %816 = vmatpush1.msra.mxu0 0.0
      %817 = vmatprep.subr.mxu0 0.0
      %818 = vmatpush1.msra.mxu0 0.0
      %819 = vmatprep.subr.mxu0 0.0
      %820 = vmatpush1.msra.mxu0 0.0
      %821 = vmatprep.subr.mxu0 0.0
      %822 = vmatpush1.msra.mxu0 0.0
      %823 = vmatprep.subr.mxu0 0.0
      %824 = vmatpush1.msra.mxu0 0.0
      %825 = vmatprep.subr.mxu0 0.0
      %826 = vmatpush1.msra.mxu0 0.0
      %827 = vmatprep.subr.mxu0 0.0
      %828 = vmatpush1.msra.mxu0 0.0
      %829 = vmatprep.subr.mxu0 0.0
      %830 = vmatpush1.msra.mxu0 0.0
      %831 = vmatprep.subr.mxu0 0.0
      %832 = vmatpush1.msra.mxu0 0.0
      %833 = vmatprep.subr.mxu0 0.0
      %834 = vmatpush1.msra.mxu0 0.0
      %835 = vmatprep.subr.mxu0 0.0
      %836 = vmatpush1.msra.mxu0 0.0
      %837 = vmatprep.subr.mxu0 0.0
      %838 = vmatpush1.msra.mxu0 0.0
      %839 = vmatprep.subr.mxu0 0.0
      %840 = vmatpush1.msra.mxu0 0.0
      %841 = vmatprep.subr.mxu0 0.0
      %842 = vmatpush1.msra.mxu0 0.0
      %843 = vmatprep.mubr.f32.mxu0 0.0
      %844 = vmatmul.mubr.f32.gmra.mrb[0].mxu0 %v732
      %v845 = vpop.f32.mrb[0].mxu0
      %v846 = vadd.f32 0.0, %v845
      %v847 = vpop.f32.mrb[0].mxu0
      %v848 = vadd.f32 0.0, %v847
      %849 = vmatprep.mubr.f32.mxu0 0.0
      %850 = vmatmul.mubr.f32.gmra.mrb[0].mxu0 %v735
      %v851 = vpop.f32.mrb[0].mxu0
      %v852 = vadd.f32 0.0, %v851
      %v853 = vpop.f32.mrb[0].mxu0
      %v854 = vadd.f32 0.0, %v853
      %855 = vmatprep.mubr.f32.mxu0 0.0
      %856 = vmatmul.mubr.f32.gmra.mrb[0].mxu0 %v738
      %v857 = vpop.f32.mrb[0].mxu0
      %v858 = vadd.f32 0.0, %v857
      %v859 = vpop.f32.mrb[0].mxu0
      %v860 = vadd.f32 0.0, %v859
      %861 = vmatprep.mubr.f32.mxu0 0.0
      %862 = vmatmul.mubr.f32.gmra.mrb[0].mxu0 %v741
      %v863 = vpop.f32.mrb[0].mxu0
      %v864 = vadd.f32 0.0, %v863
      %v865 = vpop.f32.mrb[0].mxu0
      %v866 = vadd.f32 0.0, %v865
      %867 = vmatprep.mubr.f32.mxu0 0.0
      %868 = vmatmul.mubr.f32.gmra.mrb[0].mxu0 %v744
      %v869 = vpop.f32.mrb[0].mxu0
      %v870 = vadd.f32 0.0, %v869
      %v871 = vpop.f32.mrb[0].mxu0
      %v872 = vadd.f32 0.0, %v871
      %873 = vmatprep.mubr.f32.mxu0 0.0
      %874 = vmatmul.mubr.f32.gmra.mrb[0].mxu0 %v747
      %v875 = vpop.f32.mrb[0].mxu0
      %v876 = vadd.f32 0.0, %v875
      %v877 = vpop.f32.mrb[0].mxu0
      %v878 = vadd.f32 0.0, %v877
      %879 = vmatprep.mubr.f32.mxu0 0.0
      %880 = vmatmul.mubr.f32.gmra.mrb[0].mxu0 %v750
      %v881 = vpop.f32.mrb[0].mxu0
      %v882 = vadd.f32 0.0, %v881
      %v883 = vpop.f32.mrb[0].mxu0
      %v884 = vadd.f32 0.0, %v883
      %885 = vmatprep.mubr.f32.mxu0 0.0
      %886 = vmatmul.mubr.f32.gmra.mrb[0].mxu0 %v753
      %v887 = vpop.f32.mrb[0].mxu0
      %v888 = vadd.f32 0.0, %v887
      %v889 = vpop.f32.mrb[0].mxu0
      %v890 = vadd.f32 0.0, %v889
      %891 = vmatprep.mubr.f32.mxu0 0.0
      %892 = vmatmul.mubr.f32.gmra.mrb[0].mxu0 %v756
      %v893 = vpop.f32.mrb[0].mxu0
      %v894 = vadd.f32 0.0, %v893
      %v895 = vpop.f32.mrb[0].mxu0
      %v896 = vadd.f32 0.0, %v895
      %897 = vmatprep.mubr.f32.mxu0 0.0
      %898 = vmatmul.mubr.f32.gmra.mrb[0].mxu0 %v759
      %v899 = vpop.f32.mrb[0].mxu0
      %v900 = vadd.f32 0.0, %v899
      %v901 = vpop.f32.mrb[0].mxu0
      %v902 = vadd.f32 0.0, %v901
      %903 = vmatprep.mubr.f32.mxu0 0.0
      %904 = vmatmul.mubr.f32.gmra.mrb[0].mxu0 %v762
      %v905 = vpop.f32.mrb[0].mxu0
      %v906 = vadd.f32 0.0, %v905
      %v907 = vpop.f32.mrb[0].mxu0
      %v908 = vadd.f32 0.0, %v907
      %909 = vmatprep.mubr.f32.mxu0 0.0
      %910 = vmatmul.mubr.f32.gmra.mrb[0].mxu0 %v765
      %v911 = vpop.f32.mrb[0].mxu0
      %v912 = vadd.f32 0.0, %v911
      %v913 = vpop.f32.mrb[0].mxu0
      %v914 = vadd.f32 0.0, %v913
      %915 = vmatprep.mubr.f32.mxu0 0.0
      %916 = vmatmul.mubr.f32.gmra.mrb[0].mxu0 %v768
      %v917 = vpop.f32.mrb[0].mxu0
      %v918 = vadd.f32 0.0, %v917
      %v919 = vpop.f32.mrb[0].mxu0
      %v920 = vadd.f32 0.0, %v919
      %921 = vmatprep.mubr.f32.mxu0 0.0
      %922 = vmatmul.mubr.f32.gmra.mrb[0].mxu0 %v771
      %v923 = vpop.f32.mrb[0].mxu0
      %v924 = vadd.f32 0.0, %v923
      %v925 = vpop.f32.mrb[0].mxu0
      %v926 = vadd.f32 0.0, %v925
      %927 = vmatprep.mubr.f32.mxu0 0.0
      %928 = vmatmul.mubr.f32.gmra.mrb[0].mxu0 %v774
      %v929 = vpop.f32.mrb[0].mxu0
      %v930 = vadd.f32 0.0, %v929
      %v931 = vpop.f32.mrb[0].mxu0
      %v932 = vadd.f32 0.0, %v931
      %933 = vmatprep.mubr.f32.mxu0 0.0
      %934 = vmatmul.mubr.f32.gmra.mrb[0].mxu0 %v777
      %v935 = vpop.f32.mrb[0].mxu0
      %v936 = vadd.f32 0.0, %v935
      %v937 = vpop.f32.mrb[0].mxu0
      %v938 = vadd.f32 0.0, %v937
      %939 = vdwg.mxu0
      %940 = vmatprep.subr.mxu0 %v701
      %941 = vmatpush1.msra.mxu0 %v700
      %942 = vmatprep.subr.mxu0 %v705
      %943 = vmatpush1.msra.mxu0 %v704
      %944 = vmatprep.subr.mxu0 %v709
      %945 = vmatpush1.msra.mxu0 %v708
      %946 = vmatprep.subr.mxu0 %v713
      %947 = vmatpush1.msra.mxu0 %v712
      %948 = vmatprep.subr.mxu0 %v717
      %949 = vmatpush1.msra.mxu0 %v716
      %950 = vmatprep.subr.mxu0 %v721
      %951 = vmatpush1.msra.mxu0 %v720
      %952 = vmatprep.subr.mxu0 %v725
      %953 = vmatpush1.msra.mxu0 %v724
      %954 = vmatprep.subr.mxu0 %v729
      %955 = vmatpush1.msra.mxu0 %v728
      %956 = vmatprep.subr.mxu0 0.0
      %957 = vmatpush1.msra.mxu0 0.0
      %958 = vmatprep.subr.mxu0 0.0
      %959 = vmatpush1.msra.mxu0 0.0
      %960 = vmatprep.subr.mxu0 0.0
      %961 = vmatpush1.msra.mxu0 0.0
      %962 = vmatprep.subr.mxu0 0.0
      %963 = vmatpush1.msra.mxu0 0.0
      %964 = vmatprep.subr.mxu0 0.0
      %965 = vmatpush1.msra.mxu0 0.0
      %966 = vmatprep.subr.mxu0 0.0
      %967 = vmatpush1.msra.mxu0 0.0
      %968 = vmatprep.subr.mxu0 0.0
      %969 = vmatpush1.msra.mxu0 0.0
      %970 = vmatprep.subr.mxu0 0.0
      %971 = vmatpush1.msra.mxu0 0.0
      %972 = vmatprep.subr.mxu0 0.0
      %973 = vmatpush1.msra.mxu0 0.0
      %974 = vmatprep.subr.mxu0 0.0
      %975 = vmatpush1.msra.mxu0 0.0
      %976 = vmatprep.subr.mxu0 0.0
      %977 = vmatpush1.msra.mxu0 0.0
      %978 = vmatprep.subr.mxu0 0.0
      %979 = vmatpush1.msra.mxu0 0.0
      %980 = vmatprep.subr.mxu0 0.0
      %981 = vmatpush1.msra.mxu0 0.0
      %982 = vmatprep.subr.mxu0 0.0
      %983 = vmatpush1.msra.mxu0 0.0
      %984 = vmatprep.subr.mxu0 0.0
      %985 = vmatpush1.msra.mxu0 0.0
      %986 = vmatprep.subr.mxu0 0.0
      %987 = vmatpush1.msra.mxu0 0.0
      %988 = vmatprep.subr.mxu0 0.0
      %989 = vmatpush1.msra.mxu0 0.0
      %990 = vmatprep.subr.mxu0 0.0
      %991 = vmatpush1.msra.mxu0 0.0
      %992 = vmatprep.subr.mxu0 0.0
      %993 = vmatpush1.msra.mxu0 0.0
      %994 = vmatprep.subr.mxu0 0.0
      %995 = vmatpush1.msra.mxu0 0.0
      %996 = vmatprep.subr.mxu0 0.0
      %997 = vmatpush1.msra.mxu0 0.0
      %998 = vmatprep.subr.mxu0 0.0
      %999 = vmatpush1.msra.mxu0 0.0
      %1000 = vmatprep.subr.mxu0 0.0
      %1001 = vmatpush1.msra.mxu0 0.0
      %1002 = vmatprep.subr.mxu0 0.0
      %1003 = vmatpush1.msra.mxu0 0.0
      %1004 = vmatprep.mubr.f32.mxu0 0.0
      %1005 = vmatmul.mubr.f32.gmra.mrb[0].mxu0 %v732
      %v1006 = vpop.f32.mrb[0].mxu0
      %v1007 = vadd.f32 0.0, %v1006
      %v1008 = vpop.f32.mrb[0].mxu0
      %v1009 = vadd.f32 0.0, %v1008
      %1010 = vmatprep.mubr.f32.mxu0 0.0
      %1011 = vmatmul.mubr.f32.gmra.mrb[0].mxu0 %v735
      %v1012 = vpop.f32.mrb[0].mxu0
      %v1013 = vadd.f32 0.0, %v1012
      %v1014 = vpop.f32.mrb[0].mxu0
      %v1015 = vadd.f32 0.0, %v1014
      %1016 = vmatprep.mubr.f32.mxu0 0.0
      %1017 = vmatmul.mubr.f32.gmra.mrb[0].mxu0 %v738
      %v1018 = vpop.f32.mrb[0].mxu0
      %v1019 = vadd.f32 0.0, %v1018
      %v1020 = vpop.f32.mrb[0].mxu0
      %v1021 = vadd.f32 0.0, %v1020
      %1022 = vmatprep.mubr.f32.mxu0 0.0
      %1023 = vmatmul.mubr.f32.gmra.mrb[0].mxu0 %v741
      %v1024 = vpop.f32.mrb[0].mxu0
      %v1025 = vadd.f32 0.0, %v1024
      %v1026 = vpop.f32.mrb[0].mxu0
      %v1027 = vadd.f32 0.0, %v1026
      %1028 = vmatprep.mubr.f32.mxu0 0.0
      %1029 = vmatmul.mubr.f32.gmra.mrb[0].mxu0 %v744
      %v1030 = vpop.f32.mrb[0].mxu0
      %v1031 = vadd.f32 0.0, %v1030
      %v1032 = vpop.f32.mrb[0].mxu0
      %v1033 = vadd.f32 0.0, %v1032
      %1034 = vmatprep.mubr.f32.mxu0 0.0
      %1035 = vmatmul.mubr.f32.gmra.mrb[0].mxu0 %v747
      %v1036 = vpop.f32.mrb[0].mxu0
      %v1037 = vadd.f32 0.0, %v1036
      %v1038 = vpop.f32.mrb[0].mxu0
      %v1039 = vadd.f32 0.0, %v1038
      %1040 = vmatprep.mubr.f32.mxu0 0.0
      %1041 = vmatmul.mubr.f32.gmra.mrb[0].mxu0 %v750
      %v1042 = vpop.f32.mrb[0].mxu0
      %v1043 = vadd.f32 0.0, %v1042
      %v1044 = vpop.f32.mrb[0].mxu0
      %v1045 = vadd.f32 0.0, %v1044
      %1046 = vmatprep.mubr.f32.mxu0 0.0
      %1047 = vmatmul.mubr.f32.gmra.mrb[0].mxu0 %v753
      %v1048 = vpop.f32.mrb[0].mxu0
      %v1049 = vadd.f32 0.0, %v1048
      %v1050 = vpop.f32.mrb[0].mxu0
      %v1051 = vadd.f32 0.0, %v1050
      %1052 = vmatprep.mubr.f32.mxu0 0.0
      %1053 = vmatmul.mubr.f32.gmra.mrb[0].mxu0 %v756
      %v1054 = vpop.f32.mrb[0].mxu0
      %v1055 = vadd.f32 0.0, %v1054
      %v1056 = vpop.f32.mrb[0].mxu0
      %v1057 = vadd.f32 0.0, %v1056
      %1058 = vmatprep.mubr.f32.mxu0 0.0
      %1059 = vmatmul.mubr.f32.gmra.mrb[0].mxu0 %v759
      %v1060 = vpop.f32.mrb[0].mxu0
      %v1061 = vadd.f32 0.0, %v1060
      %v1062 = vpop.f32.mrb[0].mxu0
      %v1063 = vadd.f32 0.0, %v1062
      %1064 = vmatprep.mubr.f32.mxu0 0.0
      %1065 = vmatmul.mubr.f32.gmra.mrb[0].mxu0 %v762
      %v1066 = vpop.f32.mrb[0].mxu0
      %v1067 = vadd.f32 0.0, %v1066
      %v1068 = vpop.f32.mrb[0].mxu0
      %v1069 = vadd.f32 0.0, %v1068
      %1070 = vmatprep.mubr.f32.mxu0 0.0
      %1071 = vmatmul.mubr.f32.gmra.mrb[0].mxu0 %v765
      %v1072 = vpop.f32.mrb[0].mxu0
      %v1073 = vadd.f32 0.0, %v1072
      %v1074 = vpop.f32.mrb[0].mxu0
      %v1075 = vadd.f32 0.0, %v1074
      %1076 = vmatprep.mubr.f32.mxu0 0.0
      %1077 = vmatmul.mubr.f32.gmra.mrb[0].mxu0 %v768
      %v1078 = vpop.f32.mrb[0].mxu0
      %v1079 = vadd.f32 0.0, %v1078
      %v1080 = vpop.f32.mrb[0].mxu0
      %v1081 = vadd.f32 0.0, %v1080
      %1082 = vmatprep.mubr.f32.mxu0 0.0
      %1083 = vmatmul.mubr.f32.gmra.mrb[0].mxu0 %v771
      %v1084 = vpop.f32.mrb[0].mxu0
      %v1085 = vadd.f32 0.0, %v1084
      %v1086 = vpop.f32.mrb[0].mxu0
      %v1087 = vadd.f32 0.0, %v1086
      %1088 = vmatprep.mubr.f32.mxu0 0.0
      %1089 = vmatmul.mubr.f32.gmra.mrb[0].mxu0 %v774
      %v1090 = vpop.f32.mrb[0].mxu0
      %v1091 = vadd.f32 0.0, %v1090
      %v1092 = vpop.f32.mrb[0].mxu0
      %v1093 = vadd.f32 0.0, %v1092
      %1094 = vmatprep.mubr.f32.mxu0 0.0
      %1095 = vmatmul.mubr.f32.gmra.mrb[0].mxu0 %v777
      %v1096 = vpop.f32.mrb[0].mxu0
      %v1097 = vadd.f32 0.0, %v1096
      %v1098 = vpop.f32.mrb[0].mxu0
      %v1099 = vadd.f32 0.0, %v1098
      %1100 = vdwg.mxu0
      %s1101 = sadd.s32 %s21, %s22
      %s1102 = smul.u32 %s1101, 512
      %v1103 = vlaneseq
      %v1104 = vand.u32 %v1103, 127
      %v1105 = vadd.s32 %v1104, 128
      %v1106 = vadd.s32 %v1104, 256
      %v1107 = vadd.s32 %v1104, 384
      %v1108 = vstv %s1102
      %v1109 = vadd.s32 %v1108, %v1104
      %v1110 = vadd.s32 %v1108, %v1105
      %v1111 = vadd.s32 %v1108, %v1106
      %v1112 = vadd.s32 %v1108, %v1107
      %vm1113 = vcmp.lt.s32.totalorder %v1109, 512
      %vm1114 = vcmp.lt.s32.totalorder %v1110, 512
      %vm1115 = vcmp.lt.s32.totalorder %v1111, 512
      %vm1116 = vcmp.lt.s32.totalorder %v1112, 512
      %v1117 = vsel %vm1113, 1, 0
      %v1118 = vsel %vm1114, 1, 0
      %v1119 = vsel %vm1115, 1, 0
      %v1120 = vsel %vm1116, 1, 0
      %vm1121 = vcmp.eq.s32.totalorder %v1117, 1
      %vm1122 = vcmp.eq.s32.totalorder %v1118, 1
      %vm1123 = vcmp.eq.s32.totalorder %v1119, 1
      %vm1124 = vcmp.eq.s32.totalorder %v1120, 1
      %v1125 = vsel %vm1121, %v846, 0.0
      %v1126 = vsel %vm1122, %v848, 0.0
      %v1127 = vsel %vm1123, %v1007, 0.0
      %v1128 = vsel %vm1124, %v1009, 0.0
      %v1129 = vsel %vm1121, %v852, 0.0
      %v1130 = vsel %vm1122, %v854, 0.0
      %v1131 = vsel %vm1123, %v1013, 0.0
      %v1132 = vsel %vm1124, %v1015, 0.0
      %v1133 = vsel %vm1121, %v858, 0.0
      %v1134 = vsel %vm1122, %v860, 0.0
      %v1135 = vsel %vm1123, %v1019, 0.0
      %v1136 = vsel %vm1124, %v1021, 0.0
      %v1137 = vsel %vm1121, %v864, 0.0
      %v1138 = vsel %vm1122, %v866, 0.0
      %v1139 = vsel %vm1123, %v1025, 0.0
      %v1140 = vsel %vm1124, %v1027, 0.0
      %v1141 = vsel %vm1121, %v870, 0.0
      %v1142 = vsel %vm1122, %v872, 0.0
      %v1143 = vsel %vm1123, %v1031, 0.0
      %v1144 = vsel %vm1124, %v1033, 0.0
      %v1145 = vsel %vm1121, %v876, 0.0
      %v1146 = vsel %vm1122, %v878, 0.0
      %v1147 = vsel %vm1123, %v1037, 0.0
      %v1148 = vsel %vm1124, %v1039, 0.0
      %v1149 = vsel %vm1121, %v882, 0.0
      %v1150 = vsel %vm1122, %v884, 0.0
      %v1151 = vsel %vm1123, %v1043, 0.0
      %v1152 = vsel %vm1124, %v1045, 0.0
      %v1153 = vsel %vm1121, %v888, 0.0
      %v1154 = vsel %vm1122, %v890, 0.0
      %v1155 = vsel %vm1123, %v1049, 0.0
      %v1156 = vsel %vm1124, %v1051, 0.0
      %v1157 = vsel %vm1121, %v894, 0.0
      %v1158 = vsel %vm1122, %v896, 0.0
      %v1159 = vsel %vm1123, %v1055, 0.0
      %v1160 = vsel %vm1124, %v1057, 0.0
      %v1161 = vsel %vm1121, %v900, 0.0
      %v1162 = vsel %vm1122, %v902, 0.0
      %v1163 = vsel %vm1123, %v1061, 0.0
      %v1164 = vsel %vm1124, %v1063, 0.0
      %v1165 = vsel %vm1121, %v906, 0.0
      %v1166 = vsel %vm1122, %v908, 0.0
      %v1167 = vsel %vm1123, %v1067, 0.0
      %v1168 = vsel %vm1124, %v1069, 0.0
      %v1169 = vsel %vm1121, %v912, 0.0
      %v1170 = vsel %vm1122, %v914, 0.0
      %v1171 = vsel %vm1123, %v1073, 0.0
      %v1172 = vsel %vm1124, %v1075, 0.0
      %v1173 = vsel %vm1121, %v918, 0.0
      %v1174 = vsel %vm1122, %v920, 0.0
      %v1175 = vsel %vm1123, %v1079, 0.0
      %v1176 = vsel %vm1124, %v1081, 0.0
      %v1177 = vsel %vm1121, %v924, 0.0
      %v1178 = vsel %vm1122, %v926, 0.0
      %v1179 = vsel %vm1123, %v1085, 0.0
      %v1180 = vsel %vm1124, %v1087, 0.0
      %v1181 = vsel %vm1121, %v930, 0.0
      %v1182 = vsel %vm1122, %v932, 0.0
      %v1183 = vsel %vm1123, %v1091, 0.0
      %v1184 = vsel %vm1124, %v1093, 0.0
      %v1185 = vsel %vm1121, %v936, 0.0
      %v1186 = vsel %vm1122, %v938, 0.0
      %v1187 = vsel %vm1123, %v1097, 0.0
      %v1188 = vsel %vm1124, %v1099, 0.0
      %v1189 = vld [vmem:[%s253] sm:$0xff]
      %v1190 = vld [vmem:[%s253 + $0x8] sm:$0xff]
      %v1191 = vld [vmem:[%s253 + $0x10] sm:$0xff]
      %v1192 = vld [vmem:[%s253 + $0x18] sm:$0xff]
      %v1193 = vld [vmem:[%s253 + $0x20] sm:$0xff]
      %v1194 = vld [vmem:[%s253 + $0x28] sm:$0xff]
      %v1195 = vld [vmem:[%s253 + $0x30] sm:$0xff]
      %v1196 = vld [vmem:[%s253 + $0x38] sm:$0xff]
      %v1197 = vld [vmem:[%s253 + $0x40] sm:$0xff]
      %v1198 = vld [vmem:[%s253 + $0x48] sm:$0xff]
      %v1199 = vld [vmem:[%s253 + $0x50] sm:$0xff]
      %v1200 = vld [vmem:[%s253 + $0x58] sm:$0xff]
      %v1201 = vld [vmem:[%s253 + $0x60] sm:$0xff]
      %v1202 = vld [vmem:[%s253 + $0x68] sm:$0xff]
      %v1203 = vld [vmem:[%s253 + $0x70] sm:$0xff]
      %v1204 = vld [vmem:[%s253 + $0x78] sm:$0xff]
      %v1205 = vadd.f32 %v1125, %v1126
      %v1206 = vadd.f32 %v1205, %v1127
      %v1207 = vadd.f32 %v1206, %v1128
      %1208 = vadd.xlane.f32.xlu0 %v1207
      %v1209 = vpop.xlane.xlu0 %1208
      %v1210 = vadd.f32 %v1129, %v1130
      %v1211 = vadd.f32 %v1210, %v1131
      %v1212 = vadd.f32 %v1211, %v1132
      %1213 = vadd.xlane.f32.xlu0 %v1212
      %v1214 = vpop.xlane.xlu0 %1213
      %v1215 = vadd.f32 %v1133, %v1134
      %v1216 = vadd.f32 %v1215, %v1135
      %v1217 = vadd.f32 %v1216, %v1136
      %1218 = vadd.xlane.f32.xlu0 %v1217
      %v1219 = vpop.xlane.xlu0 %1218
      %v1220 = vadd.f32 %v1137, %v1138
      %v1221 = vadd.f32 %v1220, %v1139
      %v1222 = vadd.f32 %v1221, %v1140
      %1223 = vadd.xlane.f32.xlu0 %v1222
      %v1224 = vpop.xlane.xlu0 %1223
      %v1225 = vadd.f32 %v1141, %v1142
      %v1226 = vadd.f32 %v1225, %v1143
      %v1227 = vadd.f32 %v1226, %v1144
      %1228 = vadd.xlane.f32.xlu0 %v1227
      %v1229 = vpop.xlane.xlu0 %1228
      %v1230 = vadd.f32 %v1145, %v1146
      %v1231 = vadd.f32 %v1230, %v1147
      %v1232 = vadd.f32 %v1231, %v1148
      %1233 = vadd.xlane.f32.xlu0 %v1232
      %v1234 = vpop.xlane.xlu0 %1233
      %v1235 = vadd.f32 %v1149, %v1150
      %v1236 = vadd.f32 %v1235, %v1151
      %v1237 = vadd.f32 %v1236, %v1152
      %1238 = vadd.xlane.f32.xlu0 %v1237
      %v1239 = vpop.xlane.xlu0 %1238
      %v1240 = vadd.f32 %v1153, %v1154
      %v1241 = vadd.f32 %v1240, %v1155
      %v1242 = vadd.f32 %v1241, %v1156
      %1243 = vadd.xlane.f32.xlu0 %v1242
      %v1244 = vpop.xlane.xlu0 %1243
      %v1245 = vadd.f32 %v1157, %v1158
      %v1246 = vadd.f32 %v1245, %v1159
      %v1247 = vadd.f32 %v1246, %v1160
      %1248 = vadd.xlane.f32.xlu0 %v1247
      %v1249 = vpop.xlane.xlu0 %1248
      %v1250 = vadd.f32 %v1161, %v1162
      %v1251 = vadd.f32 %v1250, %v1163
      %v1252 = vadd.f32 %v1251, %v1164
      %1253 = vadd.xlane.f32.xlu0 %v1252
      %v1254 = vpop.xlane.xlu0 %1253
      %v1255 = vadd.f32 %v1165, %v1166
      %v1256 = vadd.f32 %v1255, %v1167
      %v1257 = vadd.f32 %v1256, %v1168
      %1258 = vadd.xlane.f32.xlu0 %v1257
      %v1259 = vpop.xlane.xlu0 %1258
      %v1260 = vadd.f32 %v1169, %v1170
      %v1261 = vadd.f32 %v1260, %v1171
      %v1262 = vadd.f32 %v1261, %v1172
      %1263 = vadd.xlane.f32.xlu0 %v1262
      %v1264 = vpop.xlane.xlu0 %1263
      %v1265 = vadd.f32 %v1173, %v1174
      %v1266 = vadd.f32 %v1265, %v1175
      %v1267 = vadd.f32 %v1266, %v1176
      %1268 = vadd.xlane.f32.xlu0 %v1267
      %v1269 = vpop.xlane.xlu0 %1268
      %v1270 = vadd.f32 %v1177, %v1178
      %v1271 = vadd.f32 %v1270, %v1179
      %v1272 = vadd.f32 %v1271, %v1180
      %1273 = vadd.xlane.f32.xlu0 %v1272
      %v1274 = vpop.xlane.xlu0 %1273
      %v1275 = vadd.f32 %v1181, %v1182
      %v1276 = vadd.f32 %v1275, %v1183
      %v1277 = vadd.f32 %v1276, %v1184
      %1278 = vadd.xlane.f32.xlu0 %v1277
      %v1279 = vpop.xlane.xlu0 %1278
      %v1280 = vadd.f32 %v1185, %v1186
      %v1281 = vadd.f32 %v1280, %v1187
      %v1282 = vadd.f32 %v1281, %v1188
      %1283 = vadd.xlane.f32.xlu0 %v1282
      %v1284 = vpop.xlane.xlu0 %1283
      %v1285 = vadd.f32 %v1189, %v1209
      %v1286 = vadd.f32 %v1190, %v1214
      %v1287 = vadd.f32 %v1191, %v1219
      %v1288 = vadd.f32 %v1192, %v1224
      %v1289 = vadd.f32 %v1193, %v1229
      %v1290 = vadd.f32 %v1194, %v1234
      %v1291 = vadd.f32 %v1195, %v1239
      %v1292 = vadd.f32 %v1196, %v1244
      %v1293 = vadd.f32 %v1197, %v1249
      %v1294 = vadd.f32 %v1198, %v1254
      %v1295 = vadd.f32 %v1199, %v1259
      %v1296 = vadd.f32 %v1200, %v1264
      %v1297 = vadd.f32 %v1201, %v1269
      %v1298 = vadd.f32 %v1202, %v1274
      %v1299 = vadd.f32 %v1203, %v1279
      %v1300 = vadd.f32 %v1204, %v1284
      %vm1301 = vcmask 7168
      %1302 = vst.msk [vmem:[%s253] sm:$0xff] %vm1301, %v1285
      %1303 = vst.msk [vmem:[%s253 + $0x8] sm:$0xff] %vm1301, %v1286
      %1304 = vst.msk [vmem:[%s253 + $0x10] sm:$0xff] %vm1301, %v1287
      %1305 = vst.msk [vmem:[%s253 + $0x18] sm:$0xff] %vm1301, %v1288
      %1306 = vst.msk [vmem:[%s253 + $0x20] sm:$0xff] %vm1301, %v1289
      %1307 = vst.msk [vmem:[%s253 + $0x28] sm:$0xff] %vm1301, %v1290
      %1308 = vst.msk [vmem:[%s253 + $0x30] sm:$0xff] %vm1301, %v1291
      %1309 = vst.msk [vmem:[%s253 + $0x38] sm:$0xff] %vm1301, %v1292
      %1310 = vst.msk [vmem:[%s253 + $0x40] sm:$0xff] %vm1301, %v1293
      %1311 = vst.msk [vmem:[%s253 + $0x48] sm:$0xff] %vm1301, %v1294
      %1312 = vst.msk [vmem:[%s253 + $0x50] sm:$0xff] %vm1301, %v1295
      %1313 = vst.msk [vmem:[%s253 + $0x58] sm:$0xff] %vm1301, %v1296
      %1314 = vst.msk [vmem:[%s253 + $0x60] sm:$0xff] %vm1301, %v1297
      %1315 = vst.msk [vmem:[%s253 + $0x68] sm:$0xff] %vm1301, %v1298
      %1316 = vst.msk [vmem:[%s253 + $0x70] sm:$0xff] %vm1301, %v1299
      %1317 = vst.msk [vmem:[%s253 + $0x78] sm:$0xff] %vm1301, %v1300
      %v1318 = vld [vmem:[%s258] sm:$0xff]
      %v1319 = vld [vmem:[%s258 + $0x8] sm:$0xff]
      %v1320 = vld [vmem:[%s258 + $0x10] sm:$0xff]
      %v1321 = vld [vmem:[%s258 + $0x18] sm:$0xff]
      %v1322 = vld [vmem:[%s258 + $0x20] sm:$0xff]
      %v1323 = vld [vmem:[%s258 + $0x28] sm:$0xff]
      %v1324 = vld [vmem:[%s258 + $0x30] sm:$0xff]
      %v1325 = vld [vmem:[%s258 + $0x38] sm:$0xff]
      %v1326 = vld [vmem:[%s258 + $0x40] sm:$0xff]
      %v1327 = vld [vmem:[%s258 + $0x48] sm:$0xff]
      %v1328 = vld [vmem:[%s258 + $0x50] sm:$0xff]
      %v1329 = vld [vmem:[%s258 + $0x58] sm:$0xff]
      %v1330 = vld [vmem:[%s258 + $0x60] sm:$0xff]
      %v1331 = vld [vmem:[%s258 + $0x68] sm:$0xff]
      %v1332 = vld [vmem:[%s258 + $0x70] sm:$0xff]
      %v1333 = vld [vmem:[%s258 + $0x78] sm:$0xff]
      %v1334 = vmul.f32 %v1125, %v1125
      %v1335 = vmul.f32 %v1126, %v1126
      %v1336 = vmul.f32 %v1127, %v1127
      %v1337 = vmul.f32 %v1128, %v1128
      %v1338 = vmul.f32 %v1129, %v1129
      %v1339 = vmul.f32 %v1130, %v1130
      %v1340 = vmul.f32 %v1131, %v1131
      %v1341 = vmul.f32 %v1132, %v1132
      %v1342 = vmul.f32 %v1133, %v1133
      %v1343 = vmul.f32 %v1134, %v1134
      %v1344 = vmul.f32 %v1135, %v1135
      %v1345 = vmul.f32 %v1136, %v1136
      %v1346 = vmul.f32 %v1137, %v1137
      %v1347 = vmul.f32 %v1138, %v1138
      %v1348 = vmul.f32 %v1139, %v1139
      %v1349 = vmul.f32 %v1140, %v1140
      %v1350 = vmul.f32 %v1141, %v1141
      %v1351 = vmul.f32 %v1142, %v1142
      %v1352 = vmul.f32 %v1143, %v1143
      %v1353 = vmul.f32 %v1144, %v1144
      %v1354 = vmul.f32 %v1145, %v1145
      %v1355 = vmul.f32 %v1146, %v1146
      %v1356 = vmul.f32 %v1147, %v1147
      %v1357 = vmul.f32 %v1148, %v1148
      %v1358 = vmul.f32 %v1149, %v1149
      %v1359 = vmul.f32 %v1150, %v1150
      %v1360 = vmul.f32 %v1151, %v1151
      %v1361 = vmul.f32 %v1152, %v1152
      %v1362 = vmul.f32 %v1153, %v1153
      %v1363 = vmul.f32 %v1154, %v1154
      %v1364 = vmul.f32 %v1155, %v1155
      %v1365 = vmul.f32 %v1156, %v1156
      %v1366 = vmul.f32 %v1157, %v1157
      %v1367 = vmul.f32 %v1158, %v1158
      %v1368 = vmul.f32 %v1159, %v1159
      %v1369 = vmul.f32 %v1160, %v1160
      %v1370 = vmul.f32 %v1161, %v1161
      %v1371 = vmul.f32 %v1162, %v1162
      %v1372 = vmul.f32 %v1163, %v1163
      %v1373 = vmul.f32 %v1164, %v1164
      %v1374 = vmul.f32 %v1165, %v1165
      %v1375 = vmul.f32 %v1166, %v1166
      %v1376 = vmul.f32 %v1167, %v1167
      %v1377 = vmul.f32 %v1168, %v1168
      %v1378 = vmul.f32 %v1169, %v1169
      %v1379 = vmul.f32 %v1170, %v1170
      %v1380 = vmul.f32 %v1171, %v1171
      %v1381 = vmul.f32 %v1172, %v1172
      %v1382 = vmul.f32 %v1173, %v1173
      %v1383 = vmul.f32 %v1174, %v1174
      %v1384 = vmul.f32 %v1175, %v1175
      %v1385 = vmul.f32 %v1176, %v1176
      %v1386 = vmul.f32 %v1177, %v1177
      %v1387 = vmul.f32 %v1178, %v1178
      %v1388 = vmul.f32 %v1179, %v1179
      %v1389 = vmul.f32 %v1180, %v1180
      %v1390 = vmul.f32 %v1181, %v1181
      %v1391 = vmul.f32 %v1182, %v1182
      %v1392 = vmul.f32 %v1183, %v1183
      %v1393 = vmul.f32 %v1184, %v1184
      %v1394 = vmul.f32 %v1185, %v1185
      %v1395 = vmul.f32 %v1186, %v1186
      %v1396 = vmul.f32 %v1187, %v1187
      %v1397 = vmul.f32 %v1188, %v1188
      %v1398 = vadd.f32 %v1334, %v1335
      %v1399 = vadd.f32 %v1398, %v1336
      %v1400 = vadd.f32 %v1399, %v1337
      %1401 = vadd.xlane.f32.xlu0 %v1400
      %v1402 = vpop.xlane.xlu0 %1401
      %v1403 = vadd.f32 %v1338, %v1339
      %v1404 = vadd.f32 %v1403, %v1340
      %v1405 = vadd.f32 %v1404, %v1341
      %1406 = vadd.xlane.f32.xlu0 %v1405
      %v1407 = vpop.xlane.xlu0 %1406
      %v1408 = vadd.f32 %v1342, %v1343
      %v1409 = vadd.f32 %v1408, %v1344
      %v1410 = vadd.f32 %v1409, %v1345
      %1411 = vadd.xlane.f32.xlu0 %v1410
      %v1412 = vpop.xlane.xlu0 %1411
      %v1413 = vadd.f32 %v1346, %v1347
      %v1414 = vadd.f32 %v1413, %v1348
      %v1415 = vadd.f32 %v1414, %v1349
      %1416 = vadd.xlane.f32.xlu0 %v1415
      %v1417 = vpop.xlane.xlu0 %1416
      %v1418 = vadd.f32 %v1350, %v1351
      %v1419 = vadd.f32 %v1418, %v1352
      %v1420 = vadd.f32 %v1419, %v1353
      %1421 = vadd.xlane.f32.xlu0 %v1420
      %v1422 = vpop.xlane.xlu0 %1421
      %v1423 = vadd.f32 %v1354, %v1355
      %v1424 = vadd.f32 %v1423, %v1356
      %v1425 = vadd.f32 %v1424, %v1357
      %1426 = vadd.xlane.f32.xlu0 %v1425
      %v1427 = vpop.xlane.xlu0 %1426
      %v1428 = vadd.f32 %v1358, %v1359
      %v1429 = vadd.f32 %v1428, %v1360
      %v1430 = vadd.f32 %v1429, %v1361
      %1431 = vadd.xlane.f32.xlu0 %v1430
      %v1432 = vpop.xlane.xlu0 %1431
      %v1433 = vadd.f32 %v1362, %v1363
      %v1434 = vadd.f32 %v1433, %v1364
      %v1435 = vadd.f32 %v1434, %v1365
      %1436 = vadd.xlane.f32.xlu0 %v1435
      %v1437 = vpop.xlane.xlu0 %1436
      %v1438 = vadd.f32 %v1366, %v1367
      %v1439 = vadd.f32 %v1438, %v1368
      %v1440 = vadd.f32 %v1439, %v1369
      %1441 = vadd.xlane.f32.xlu0 %v1440
      %v1442 = vpop.xlane.xlu0 %1441
      %v1443 = vadd.f32 %v1370, %v1371
      %v1444 = vadd.f32 %v1443, %v1372
      %v1445 = vadd.f32 %v1444, %v1373
      %1446 = vadd.xlane.f32.xlu0 %v1445
      %v1447 = vpop.xlane.xlu0 %1446
      %v1448 = vadd.f32 %v1374, %v1375
      %v1449 = vadd.f32 %v1448, %v1376
      %v1450 = vadd.f32 %v1449, %v1377
      %1451 = vadd.xlane.f32.xlu0 %v1450
      %v1452 = vpop.xlane.xlu0 %1451
      %v1453 = vadd.f32 %v1378, %v1379
      %v1454 = vadd.f32 %v1453, %v1380
      %v1455 = vadd.f32 %v1454, %v1381
      %1456 = vadd.xlane.f32.xlu0 %v1455
      %v1457 = vpop.xlane.xlu0 %1456
      %v1458 = vadd.f32 %v1382, %v1383
      %v1459 = vadd.f32 %v1458, %v1384
      %v1460 = vadd.f32 %v1459, %v1385
      %1461 = vadd.xlane.f32.xlu0 %v1460
      %v1462 = vpop.xlane.xlu0 %1461
      %v1463 = vadd.f32 %v1386, %v1387
      %v1464 = vadd.f32 %v1463, %v1388
      %v1465 = vadd.f32 %v1464, %v1389
      %1466 = vadd.xlane.f32.xlu0 %v1465
      %v1467 = vpop.xlane.xlu0 %1466
      %v1468 = vadd.f32 %v1390, %v1391
      %v1469 = vadd.f32 %v1468, %v1392
      %v1470 = vadd.f32 %v1469, %v1393
      %1471 = vadd.xlane.f32.xlu0 %v1470
      %v1472 = vpop.xlane.xlu0 %1471
      %v1473 = vadd.f32 %v1394, %v1395
      %v1474 = vadd.f32 %v1473, %v1396
      %v1475 = vadd.f32 %v1474, %v1397
      %1476 = vadd.xlane.f32.xlu0 %v1475
      %v1477 = vpop.xlane.xlu0 %1476
      %v1478 = vadd.f32 %v1318, %v1402
      %v1479 = vadd.f32 %v1319, %v1407
      %v1480 = vadd.f32 %v1320, %v1412
      %v1481 = vadd.f32 %v1321, %v1417
      %v1482 = vadd.f32 %v1322, %v1422
      %v1483 = vadd.f32 %v1323, %v1427
      %v1484 = vadd.f32 %v1324, %v1432
      %v1485 = vadd.f32 %v1325, %v1437
      %v1486 = vadd.f32 %v1326, %v1442
      %v1487 = vadd.f32 %v1327, %v1447
      %v1488 = vadd.f32 %v1328, %v1452
      %v1489 = vadd.f32 %v1329, %v1457
      %v1490 = vadd.f32 %v1330, %v1462
      %v1491 = vadd.f32 %v1331, %v1467
      %v1492 = vadd.f32 %v1332, %v1472
      %v1493 = vadd.f32 %v1333, %v1477
      %1494 = vst.msk [vmem:[%s258] sm:$0xff] %vm1301, %v1478
      %1495 = vst.msk [vmem:[%s258 + $0x8] sm:$0xff] %vm1301, %v1479
      %1496 = vst.msk [vmem:[%s258 + $0x10] sm:$0xff] %vm1301, %v1480
      %1497 = vst.msk [vmem:[%s258 + $0x18] sm:$0xff] %vm1301, %v1481
      %1498 = vst.msk [vmem:[%s258 + $0x20] sm:$0xff] %vm1301, %v1482
      %1499 = vst.msk [vmem:[%s258 + $0x28] sm:$0xff] %vm1301, %v1483
      %1500 = vst.msk [vmem:[%s258 + $0x30] sm:$0xff] %vm1301, %v1484
      %1501 = vst.msk [vmem:[%s258 + $0x38] sm:$0xff] %vm1301, %v1485
      %1502 = vst.msk [vmem:[%s258 + $0x40] sm:$0xff] %vm1301, %v1486
      %1503 = vst.msk [vmem:[%s258 + $0x48] sm:$0xff] %vm1301, %v1487
      %1504 = vst.msk [vmem:[%s258 + $0x50] sm:$0xff] %vm1301, %v1488
      %1505 = vst.msk [vmem:[%s258 + $0x58] sm:$0xff] %vm1301, %v1489
      %1506 = vst.msk [vmem:[%s258 + $0x60] sm:$0xff] %vm1301, %v1490
      %1507 = vst.msk [vmem:[%s258 + $0x68] sm:$0xff] %vm1301, %v1491
      %1508 = vst.msk [vmem:[%s258 + $0x70] sm:$0xff] %vm1301, %v1492
      %1509 = vst.msk [vmem:[%s258 + $0x78] sm:$0xff] %vm1301, %v1493
      %p1510 = scmp.lt.s32.totalorder %s21, 1
      %s1511 = scalar_select %p1510, %s21, 1
      %s1512 = smul.addr %s1511, 16
      %s1513 = smul.addr %s1512, 8
      %s1514 = scalar_lea.vmem %s4, %s1513
      %p1515 = scmp.lt.s32.totalorder %s21, 1
      %s1516 = scalar_select %p1515, %s21, 1
      %s1517 = smul.addr %s1516, 16
      %s1518 = smul.addr %s1517, 8
      %s1519 = scalar_lea.vmem %s5, %s1518
      // Predicated region
      $region41: #{tpu_custom_call.1} parent=35 // pred_check
        %p1520 = pneg %p138
      $region42: #{tpu_custom_call.1} parent=35 // pred_check_branch
        %1522 = sbr.rel (%p1520) target = $region44
      $region43: #{tpu_custom_call.1} parent=35 // pred_region
        _
      $region44: #{tpu_custom_call.1} parent=35 // pred_fallthru
        _
      // Predicated region
      $region45: #{tpu_custom_call.1} parent=35 // pred_check
        %p1523 = pneg %p164
      $region46: #{tpu_custom_call.1} parent=35 // pred_check_branch
        %1525 = sbr.rel (%p1523) target = $region48
      $region47: #{tpu_custom_call.1} parent=35 // pred_region
        _
      $region48: #{tpu_custom_call.1} parent=35 // pred_fallthru
        _
    $region36: #{tpu_custom_call.1} parent=5 // pred_fallthru
      _
    %p1526 = scmp.le.s32.totalorder 2, %s12
    // Predicated region
    $region49: #{tpu_custom_call.1} parent=5 // pred_check
      %p1527 = pneg %p1526
    $region50: #{tpu_custom_call.1} parent=5 // pred_check_branch
      %1529 = sbr.rel (%p1527) target = $region52
    $region51: #{tpu_custom_call.1} parent=5 // pred_region
      %s1530 = ssub.s32 %s12, 2
      // Predicated region
      $region53: #{tpu_custom_call.1} parent=51 // pred_check
        %p1531 = pneg %p144
      $region54: #{tpu_custom_call.1} parent=51 // pred_check_branch
        %1533 = sbr.rel (%p1531) target = $region56
      $region55: #{tpu_custom_call.1} parent=51 // pred_region
        %p1534 = scmp.lt.s32.totalorder %s23, 1
        %s1535 = scalar_select %p1534, %s23, 1
        %s1536 = smul.addr %s1535, 16
        %s1537 = smul.addr %s1536, 8
        %s1538 = scalar_lea.vmem %s4, %s1537
      $region56: #{tpu_custom_call.1} parent=51 // pred_fallthru
        _
      // Predicated region
      $region57: #{tpu_custom_call.1} parent=51 // pred_check
        %p1539 = pneg %p170
      $region58: #{tpu_custom_call.1} parent=51 // pred_check_branch
        %1541 = sbr.rel (%p1539) target = $region60
      $region59: #{tpu_custom_call.1} parent=51 // pred_region
        %p1542 = scmp.lt.s32.totalorder %s23, 1
        %s1543 = scalar_select %p1542, %s23, 1
        %s1544 = smul.addr %s1543, 16
        %s1545 = smul.addr %s1544, 8
        %s1546 = scalar_lea.vmem %s5, %s1545
      $region60: #{tpu_custom_call.1} parent=51 // pred_fallthru
        _
    $region52: #{tpu_custom_call.1} parent=5 // pred_fallthru
      _
  $region6: #{tpu_custom_call.1} parent=0 // loop_footer
    %s16 = sadd.s32 1, %s12
  $region7: #{tpu_custom_call.1} parent=0 // loop_footer_branch
    %11 = sbr.rel target = $region3
  $region8: #{tpu_custom_call.1} parent=0 // loop_exit
    _

</llo_original>
